<compile_context>
chip_gen: v5e
topology: v5e:2x2
jax: 0.10.0
libtpu: 0.0.40
codegen_flags: <defaults>
</compile_context>

<pallas_src>
import jax
import jax.numpy as jnp
from jax import lax
from jax.experimental import pallas as pl
from jax.experimental.pallas import tpu as pltpu

EPS = 1e-5            # nn.BatchNorm1d default eps
LEAKY_SLOPE = 0.01    # nn.LeakyReLU default negative_slope
LANE = 128
NEG_MASK = -1e30      # baked into t2' for padded output lanes


def _round_up(x, m):
    return (x + m - 1) // m * m


def _vmem_limit(need_bytes):
    # Size the scoped-VMEM request from tile math (+ headroom); cap well under
    # v7x's 64 MiB physical VMEM per TensorCore (also fine on v5e/v6e).
    return int(min(max(need_bytes + (4 << 20), 8 << 20), 32 << 20))


# ---------- fused path: whole forward in one kernel (A resident in VMEM) ----------
def _fused_kernel(a_ref, x_ref, w2_ref, s1_ref, t1_ref, t2_ref, o_ref):
    a = a_ref[...]                                               # bf16, read once
    h = jnp.dot(a, x_ref[...], preferred_element_type=jnp.float32)
    h = h * s1_ref[...] + t1_ref[...]                            # folded BN1 (eval)
    h1 = jnp.where(h > 0, h, LEAKY_SLOPE * h)                    # LeakyReLU
    # TODO(synk): training-mode dropout would need a pltpu.prng_* mask here.
    h1w = jnp.dot(h1.astype(jnp.bfloat16), w2_ref[...],
                  preferred_element_type=jnp.float32)            # gcn2 weight (BN2-folded)
    z = jnp.dot(a, h1w.astype(jnp.bfloat16),
                preferred_element_type=jnp.float32) + t2_ref[...]
    m = jnp.max(z, axis=-1, keepdims=True)
    e = jnp.exp(z - m)
    o_ref[...] = (e / jnp.sum(e, axis=-1, keepdims=True)).astype(o_ref.dtype)


# ---------- streaming pass 1: h1w = LeakyReLU(BN1(A @ X)) @ W2' ----------
def _pass1_kernel(a_ref, x_ref, w2_ref, s1_ref, t1_ref, o_ref):
    # Full-depth contraction of one A row block against resident X (no acc RMW).
    h = jnp.dot(a_ref[...], x_ref[...], preferred_element_type=jnp.float32)
    h = h * s1_ref[...] + t1_ref[...]                            # folded BN1 (eval)
    h1 = jnp.where(h > 0, h, LEAKY_SLOPE * h)                    # LeakyReLU
    # TODO(synk): training-mode dropout would need a pltpu.prng_* mask here.
    o_ref[...] = jnp.dot(h1.astype(jnp.bfloat16), w2_ref[...],
                         preferred_element_type=jnp.float32).astype(o_ref.dtype)


# ---------- streaming pass 2: out = softmax(A @ h1w + t2') ----------
def _pass2_kernel(a_ref, h_ref, t2_ref, o_ref):
    z = jnp.dot(a_ref[...], h_ref[...], preferred_element_type=jnp.float32)
    z = z + t2_ref[...]                  # folded gcn2-bias + BN2; padded lanes -> -1e30
    m = jnp.max(z, axis=-1, keepdims=True)
    e = jnp.exp(z - m)
    o_ref[...] = (e / jnp.sum(e, axis=-1, keepdims=True)).astype(o_ref.dtype)


def gcn_forward(a_hat, x, w2, b2, bn1_params, bn2_params, *,
                tm=256, fuse_vmem_bytes=24 << 20):
    n, in_dim = x.shape
    out_dim = w2.shape[1]
    dp_in = _round_up(in_dim, LANE)
    dp_out = _round_up(out_dim, LANE)

    # Estimated VMEM need of the fused path (inputs + output + f32 intermediates).
    n_f = _round_up(n, LANE)
    fused_need = (n_f * n_f * 2 + n_f * dp_in * 2 + dp_in * dp_out * 2
                  + n_f * dp_out * 4 + 3 * n_f * dp_in * 4 + 2 * n_f * dp_out * 4)
    fused = fused_need <= fuse_vmem_bytes

    n_pad = n_f if fused else _round_up(n, tm)

    # ---- fold BatchNorms (eval: running stats) ----
    g1, be1, m1, v1 = bn1_params
    s1u = g1 * lax.rsqrt(v1 + EPS)
    t1u = be1 - m1 * s1u
    g2, be2, m2, v2 = bn2_params
    s2u = g2 * lax.rsqrt(v2 + EPS)
    t2u = be2 - m2 * s2u

    s1 = jnp.pad(s1u, ((0, 0), (0, dp_in - in_dim)))
    t1 = jnp.pad(t1u, ((0, 0), (0, dp_in - in_dim)))
    # BN2 folded into the gcn2 weight; gcn2 bias + BN2 shift folded into t2'.
    w2f = jnp.pad(w2 * s2u, ((0, dp_in - in_dim), (0, dp_out - out_dim))
                  ).astype(jnp.bfloat16)
    t2p = jnp.pad((b2 * s2u + t2u).astype(jnp.float32),
                  ((0, 0), (0, dp_out - out_dim)),
                  constant_values=NEG_MASK)                   # padded-lane mask baked in

    # bf16 streaming operands (MXU accumulates f32); BN params stay f32.
    # TODO(synk): for large N, supply A pre-padded in bf16 upstream to avoid this
    # extra full NxN HBM read/write before an A-bandwidth-bound kernel.
    a_p = jnp.pad(a_hat, ((0, n_pad - n), (0, n_pad - n))).astype(jnp.bfloat16)
    x_p = jnp.pad(x, ((0, n_pad - n), (0, dp_in - in_dim))).astype(jnp.bfloat16)

    if fused:
        out = pl.pallas_call(
            _fused_kernel,
            out_shape=jax.ShapeDtypeStruct((n_pad, dp_out), jnp.float32),
            grid=(1,),
            in_specs=[
                pl.BlockSpec((n_pad, n_pad), lambda i: (0, 0)),    # A (resident)
                pl.BlockSpec((n_pad, dp_in), lambda i: (0, 0)),    # X (resident)
                pl.BlockSpec((dp_in, dp_out), lambda i: (0, 0)),   # W2' bf16
                pl.BlockSpec((1, dp_in), lambda i: (0, 0)),        # BN1 scale
                pl.BlockSpec((1, dp_in), lambda i: (0, 0)),        # BN1 shift
                pl.BlockSpec((1, dp_out), lambda i: (0, 0)),       # t2' (+mask)
            ],
            out_specs=pl.BlockSpec((n_pad, dp_out), lambda i: (0, 0)),
            compiler_params=pltpu.CompilerParams(
                dimension_semantics=("arbitrary",),
                vmem_limit_bytes=_vmem_limit(fused_need)),
        )(a_p, x_p, w2f, s1, t1, t2p)
        return out[:n, :out_dim]

    # ---- streaming (large-N) path: two calls, K axis collapsed ----
    nb = n_pad // tm
    # NOTE: on v7x (2 TensorCores sharing the "parallel" row axis) prefer an even
    # nb so both cores get equal row-block counts; neutral on v5e/v6e.
    need1 = (2 * tm * n_pad * 2 + 2 * n_pad * dp_in * 2 + dp_in * dp_out * 2
             + 2 * tm * dp_out * 2 + 2 * tm * dp_in * 4)
    h1w = pl.pallas_call(
        _pass1_kernel,
        out_shape=jax.ShapeDtypeStruct((n_pad, dp_out), jnp.bfloat16),
        grid=(nb,),
        in_specs=[
            pl.BlockSpec((tm, n_pad), lambda i: (i, 0)),       # A row block (full depth)
            pl.BlockSpec((n_pad, dp_in), lambda i: (0, 0)),    # X (resident)
            pl.BlockSpec((dp_in, dp_out), lambda i: (0, 0)),   # W2' bf16
            pl.BlockSpec((1, dp_in), lambda i: (0, 0)),        # BN1 scale
            pl.BlockSpec((1, dp_in), lambda i: (0, 0)),        # BN1 shift
        ],
        out_specs=pl.BlockSpec((tm, dp_out), lambda i: (i, 0)),
        compiler_params=pltpu.CompilerParams(
            dimension_semantics=("parallel",),
            vmem_limit_bytes=_vmem_limit(need1)),
    )(a_p, x_p, w2f, s1, t1)

    need2 = (2 * tm * n_pad * 2 + 2 * n_pad * dp_out * 2
             + 2 * tm * dp_out * 4 + 2 * tm * dp_out * 4)
    out = pl.pallas_call(
        _pass2_kernel,
        out_shape=jax.ShapeDtypeStruct((n_pad, dp_out), jnp.float32),
        grid=(nb,),
        in_specs=[
            pl.BlockSpec((tm, n_pad), lambda i: (i, 0)),       # A row block (full depth)
            pl.BlockSpec((n_pad, dp_out), lambda i: (0, 0)),   # h1w (resident)
            pl.BlockSpec((1, dp_out), lambda i: (0, 0)),       # t2' (+mask)
        ],
        out_specs=pl.BlockSpec((tm, dp_out), lambda i: (i, 0)),
        compiler_params=pltpu.CompilerParams(
            dimension_semantics=("parallel",),
            vmem_limit_bytes=_vmem_limit(need2)),
    )(a_p, h1w, t2p)

    return out[:n, :out_dim]


def gcn_reference(a_hat, x, w2, b2, bn1, bn2):
    """Pure-JAX f32 reference of the module's eval-mode forward."""
    g1, be1, m1, v1 = bn1
    g2, be2, m2, v2 = bn2
    h = a_hat @ x                                          # gcn1 (weight=False)
    h = (h - m1) * (g1 * lax.rsqrt(v1 + EPS)) + be1        # bn1 (dropout=id)
    h1 = jnp.where(h > 0, h, LEAKY_SLOPE * h)              # LeakyReLU
    h2 = a_hat @ (h1 @ w2) + b2                            # gcn2
    h2 = (h2 - m2) * (g2 * lax.rsqrt(v2 + EPS)) + be2      # bn2
    return jax.nn.softmax(h2, axis=-1)


def build_graph_and_params(key, n_nodes, in_dim, out_dim):
    """Deterministic synthetic graph + parameters (PyTorch-style inits)."""
    k_adj, k_ew, k_x, k_w, k_bn = jax.random.split(key, 5)

    mask = (jax.random.uniform(k_adj, (n_nodes, n_nodes)) < 0.4).astype(jnp.float32)
    mask = jnp.maximum(mask, jnp.eye(n_nodes, dtype=jnp.float32))
    edge_w = jax.random.uniform(k_ew, (n_nodes, n_nodes), minval=0.1, maxval=1.0)

    # DGL GraphConv norm='both': edge-count degrees; edge_weight scales messages.
    deg_in = jnp.sum(mask, axis=1)
    deg_out = jnp.sum(mask, axis=0)
    a_hat = (1.0 / jnp.sqrt(deg_in))[:, None] * (mask * edge_w) * \
            (1.0 / jnp.sqrt(deg_out))[None, :]

    x = jax.random.normal(k_x, (n_nodes, in_dim), dtype=jnp.float32)

    limit = jnp.sqrt(6.0 / in_dim)   # kaiming_uniform-style for gcn2 weight
    w2 = jax.random.uniform(k_w, (in_dim, out_dim), minval=-limit, maxval=limit,
                            dtype=jnp.float32)
    b2 = jnp.zeros((1, out_dim), jnp.float32)  # GraphConv bias default: zeros

    # Non-trivial eval-mode BatchNorm running stats / affine params.
    k1, k2, k3, k4 = jax.random.split(k_bn, 4)
    bn1 = (jax.random.uniform(k1, (1, in_dim), minval=0.5, maxval=1.5),
           0.1 * jax.random.normal(k2, (1, in_dim)),
           0.1 * jax.random.normal(k3, (1, in_dim)),
           jax.random.uniform(k4, (1, in_dim), minval=0.5, maxval=1.5))
    k1, k2, k3, k4 = jax.random.split(k1, 4)
    bn2 = (jax.random.uniform(k1, (1, out_dim), minval=0.5, maxval=1.5),
           0.1 * jax.random.normal(k2, (1, out_dim)),
           0.1 * jax.random.normal(k3, (1, out_dim)),
           jax.random.uniform(k4, (1, out_dim), minval=0.5, maxval=1.5))

    return a_hat, x, w2, b2, bn1, bn2


if __name__ == "__main__":
    N_NODES, IN_DIM, OUT_DIM = 256, 32, 16
    key = jax.random.PRNGKey(0)
    a_hat, x, w2, b2, bn1, bn2 = build_graph_and_params(key, N_NODES, IN_DIM, OUT_DIM)

    ref = gcn_reference(a_hat, x, w2, b2, bn1, bn2)

    # Fused path (A / X / h1w VMEM-resident) — the default for small graphs.
    out = jax.block_until_ready(gcn_forward(a_hat, x, w2, b2, bn1, bn2))
    assert out.shape == (N_NODES, OUT_DIM)
    assert jnp.allclose(jnp.sum(out, axis=-1), 1.0, atol=1e-3), \
        float(jnp.max(jnp.abs(jnp.sum(out, axis=-1) - 1.0)))
    assert jnp.allclose(out, ref, atol=2e-2), float(jnp.max(jnp.abs(out - ref)))

    # Streaming (large-N) path: force it and exercise a multi-block row grid.
    out_s = jax.block_until_ready(
        gcn_forward(a_hat, x, w2, b2, bn1, bn2, tm=128, fuse_vmem_bytes=0))
    assert out_s.shape == (N_NODES, OUT_DIM)
    assert jnp.allclose(jnp.sum(out_s, axis=-1), 1.0, atol=1e-3)
    assert jnp.allclose(out_s, ref, atol=2e-2), float(jnp.max(jnp.abs(out_s - ref)))

    print("KERNEL_OK")
</pallas_src>

<mosaic_0001>
module attributes {stable_mosaic.version = 11 : i64} {
  func.func @_fused_kernel(%arg0: i32, %arg1: memref<256x256xbf16, #tpu.memory_space<vmem>>, %arg2: memref<256x128xbf16, #tpu.memory_space<vmem>>, %arg3: memref<128x128xbf16, #tpu.memory_space<vmem>>, %arg4: memref<1x128xf32, #tpu.memory_space<vmem>>, %arg5: memref<1x128xf32, #tpu.memory_space<vmem>>, %arg6: memref<1x128xf32, #tpu.memory_space<vmem>>, %arg7: memref<256x128xf32, #tpu.memory_space<vmem>>) attributes {dimension_semantics = [#tpu.dimension_semantics<arbitrary>], iteration_bounds = array<i64: 1>, scalar_prefetch = 0 : i64, scratch_operands = 0 : i64, tpu.core_type = #tpu.core_type<tc>, window_params = [{pipeline_mode = #tpu.pipeline_mode<synchronous>, transform_indices = @transform_0, window_bounds = array<i64: 256, 256>}, {pipeline_mode = #tpu.pipeline_mode<synchronous>, transform_indices = @transform_1, window_bounds = array<i64: 256, 128>}, {pipeline_mode = #tpu.pipeline_mode<synchronous>, transform_indices = @transform_2, window_bounds = array<i64: 128, 128>}, {pipeline_mode = #tpu.pipeline_mode<synchronous>, transform_indices = @transform_3, window_bounds = array<i64: 1, 128>}, {pipeline_mode = #tpu.pipeline_mode<synchronous>, transform_indices = @transform_4, window_bounds = array<i64: 1, 128>}, {pipeline_mode = #tpu.pipeline_mode<synchronous>, transform_indices = @transform_5, window_bounds = array<i64: 1, 128>}, {pipeline_mode = #tpu.pipeline_mode<synchronous>, transform_indices = @transform_6, window_bounds = array<i64: 256, 128>}]} {
    %c0 = arith.constant 0 : index
    %c0_0 = arith.constant 0 : index
    %0 = vector.load %arg1[%c0, %c0_0] : memref<256x256xbf16, #tpu.memory_space<vmem>>, vector<256x256xbf16>
    %c0_1 = arith.constant 0 : index
    %c0_2 = arith.constant 0 : index
    %1 = vector.load %arg2[%c0_1, %c0_2] : memref<256x128xbf16, #tpu.memory_space<vmem>>, vector<256x128xbf16>
    %cst = arith.constant dense<0.000000e+00> : vector<256x128xf32>
    %2 = tpu.matmul %0, %1, %cst {dimension_numbers = #tpu.dot_dimension_numbers<[1], [0], [0], [1], [0, 0, 1, 1], [], []>} : vector<256x256xbf16>, vector<256x128xbf16>, vector<256x128xf32> -> vector<256x128xf32>
    %c0_3 = arith.constant 0 : index
    %c0_4 = arith.constant 0 : index
    %3 = vector.load %arg4[%c0_3, %c0_4] : memref<1x128xf32, #tpu.memory_space<vmem>>, vector<1x128xf32>
    %4 = vector.broadcast %3 : vector<1x128xf32> to vector<256x128xf32>
    %5 = arith.mulf %2, %4 : vector<256x128xf32>
    %c0_5 = arith.constant 0 : index
    %c0_6 = arith.constant 0 : index
    %6 = vector.load %arg5[%c0_5, %c0_6] : memref<1x128xf32, #tpu.memory_space<vmem>>, vector<1x128xf32>
    %7 = vector.broadcast %6 : vector<1x128xf32> to vector<256x128xf32>
    %8 = arith.addf %5, %7 : vector<256x128xf32>
    %cst_7 = arith.constant 0.000000e+00 : f32
    %9 = vector.broadcast %cst_7 : f32 to vector<256x128xf32>
    %10 = arith.cmpf ogt, %8, %9 : vector<256x128xf32>
    %cst_8 = arith.constant 0.00999999977 : f32
    %11 = vector.broadcast %cst_8 : f32 to vector<256x128xf32>
    %12 = arith.mulf %11, %8 : vector<256x128xf32>
    %13 = arith.select %10, %8, %12 : vector<256x128xi1>, vector<256x128xf32>
    %14 = arith.truncf %13 : vector<256x128xf32> to vector<256x128xbf16>
    %c0_9 = arith.constant 0 : index
    %c0_10 = arith.constant 0 : index
    %15 = vector.load %arg3[%c0_9, %c0_10] : memref<128x128xbf16, #tpu.memory_space<vmem>>, vector<128x128xbf16>
    %cst_11 = arith.constant dense<0.000000e+00> : vector<256x128xf32>
    %16 = tpu.matmul %14, %15, %cst_11 {dimension_numbers = #tpu.dot_dimension_numbers<[1], [0], [0], [1], [0, 0, 1, 1], [], []>} : vector<256x128xbf16>, vector<128x128xbf16>, vector<256x128xf32> -> vector<256x128xf32>
    %17 = arith.truncf %16 : vector<256x128xf32> to vector<256x128xbf16>
    %cst_12 = arith.constant dense<0.000000e+00> : vector<256x128xf32>
    %18 = tpu.matmul %0, %17, %cst_12 {dimension_numbers = #tpu.dot_dimension_numbers<[1], [0], [0], [1], [0, 0, 1, 1], [], []>} : vector<256x256xbf16>, vector<256x128xbf16>, vector<256x128xf32> -> vector<256x128xf32>
    %c0_13 = arith.constant 0 : index
    %c0_14 = arith.constant 0 : index
    %19 = vector.load %arg6[%c0_13, %c0_14] : memref<1x128xf32, #tpu.memory_space<vmem>>, vector<1x128xf32>
    %20 = vector.broadcast %19 : vector<1x128xf32> to vector<256x128xf32>
    %21 = arith.addf %18, %20 : vector<256x128xf32>
    %cst_15 = arith.constant dense<0xFF800000> : vector<256xf32>
    %22 = vector.multi_reduction <maximumf>, %21, %cst_15 [1] : vector<256x128xf32> to vector<256xf32>
    %23 = vector.shape_cast %22 : vector<256xf32> to vector<256x1xf32>
    %24 = vector.broadcast %23 : vector<256x1xf32> to vector<256x128xf32>
    %25 = arith.subf %21, %24 : vector<256x128xf32>
    %26 = math.exp %25 : vector<256x128xf32>
    %cst_16 = arith.constant dense<0.000000e+00> : vector<256xf32>
    %27 = vector.multi_reduction <add>, %26, %cst_16 [1] : vector<256x128xf32> to vector<256xf32>
    %28 = vector.shape_cast %27 : vector<256xf32> to vector<256x1xf32>
    %29 = vector.broadcast %28 : vector<256x1xf32> to vector<256x128xf32>
    %30 = arith.divf %26, %29 : vector<256x128xf32>
    %c0_17 = arith.constant 0 : index
    %c0_18 = arith.constant 0 : index
    %31 = vector.load %arg7[%c0_17, %c0_18] : memref<256x128xf32, #tpu.memory_space<vmem>>, vector<256x128xf32>
    tpu.vector_store %arg7[%c0_17, %c0_18], %30 {strides = array<i32>} : memref<256x128xf32, #tpu.memory_space<vmem>>, vector<256x128xf32>,
    return
  }
  func.func @transform_0(%arg0: i32) -> (i32, i32) {
    %c0_i32 = arith.constant 0 : i32
    %c0_i32_0 = arith.constant 0 : i32
    %c0_i32_1 = arith.constant 0 : i32
    return %c0_i32, %c0_i32_0 : i32, i32
  }
  func.func @transform_1(%arg0: i32) -> (i32, i32) {
    %c0_i32 = arith.constant 0 : i32
    %c0_i32_0 = arith.constant 0 : i32
    %c0_i32_1 = arith.constant 0 : i32
    return %c0_i32, %c0_i32_0 : i32, i32
  }
  func.func @transform_2(%arg0: i32) -> (i32, i32) {
    %c0_i32 = arith.constant 0 : i32
    %c0_i32_0 = arith.constant 0 : i32
    %c0_i32_1 = arith.constant 0 : i32
    return %c0_i32, %c0_i32_0 : i32, i32
  }
  func.func @transform_3(%arg0: i32) -> (i32, i32) {
    %c0_i32 = arith.constant 0 : i32
    %c0_i32_0 = arith.constant 0 : i32
    %c0_i32_1 = arith.constant 0 : i32
    return %c0_i32, %c0_i32_0 : i32, i32
  }
  func.func @transform_4(%arg0: i32) -> (i32, i32) {
    %c0_i32 = arith.constant 0 : i32
    %c0_i32_0 = arith.constant 0 : i32
    %c0_i32_1 = arith.constant 0 : i32
    return %c0_i32, %c0_i32_0 : i32, i32
  }
  func.func @transform_5(%arg0: i32) -> (i32, i32) {
    %c0_i32 = arith.constant 0 : i32
    %c0_i32_0 = arith.constant 0 : i32
    %c0_i32_1 = arith.constant 0 : i32
    return %c0_i32, %c0_i32_0 : i32, i32
  }
  func.func @transform_6(%arg0: i32) -> (i32, i32) {
    %c0_i32 = arith.constant 0 : i32
    %c0_i32_0 = arith.constant 0 : i32
    %c0_i32_1 = arith.constant 0 : i32
    return %c0_i32, %c0_i32_0 : i32, i32
  }
}

</mosaic_0001>

<llo_original>
// kernel: tpu_custom_call.1
$region0: #{tpu_custom_call.1}
  #allocation0 [shape = 'u32[]', space=smem, size = 0x4, offset = 0x4, fixed_abs, tag = 'smem constant byte address 0x4 - core index']
  #allocation1 [shape = 'u32[72,128]{1,0:T(1,128)}', space=vmem, size = 0x9000, scoped, tag = 'internal scratch']
  %s0 = inlined_call_operand.hbm [shape: bf16[256,256], index: 0, kind: input, shape index: {}]
  %s1 = inlined_call_operand.hbm [shape: bf16[256,128], index: 1, kind: input, shape index: {}]
  %s2 = inlined_call_operand.hbm [shape: bf16[128,128], index: 2, kind: input, shape index: {}]
  %s3 = inlined_call_operand.vmem [shape: f32[1,128], index: 3, kind: input, shape index: {}]
  %s4 = inlined_call_operand.vmem [shape: f32[1,128], index: 4, kind: input, shape index: {}]
  %s5 = inlined_call_operand.vmem [shape: f32[1,128], index: 5, kind: input, shape index: {}]
  %s6 = inlined_call_operand.hbm [shape: f32[256,128], index: 6, kind: output, shape index: {}]
  %s7 = sld [smem:[#allocation0]]
  $region46: #{tpu_custom_call.1} parent=0
    _
  %s9 = ssub.s32 1, %s7
  %s10 = scalar_select 0, %s9, %s7
  $region1: #{tpu_custom_call.1} parent=0
    #allocation2 [shape = 'u8[131072]{0}', space=vmem, size = 0x20000, scoped, tag = 'input window, operand 0, single buffered']
    #allocation3 [shape = 's32[1]{0}', space=sflag, size = 0x4, scoped, tag = 'scoped memory for tpu_custom_call.1']
    #allocation4 [shape = 's32[1]{0}', space=sflag, size = 0x4, scoped, tag = 'scoped memory for tpu_custom_call.1']
    #allocation5 [shape = 'u8[65536]{0}', space=vmem, size = 0x10000, scoped, tag = 'input window, operand 1, single buffered']
    #allocation6 [shape = 's32[1]{0}', space=sflag, size = 0x4, scoped, tag = 'scoped memory for tpu_custom_call.1']
    #allocation7 [shape = 'u8[32768]{0}', space=vmem, size = 0x8000, scoped, tag = 'input window, operand 2, single buffered']
    #allocation8 [shape = 'u8[131072]{0}', space=vmem, size = 0x20000, scoped, tag = 'output window, operand 0, single buffered']
    %11 = vsyncpa [#allocation3], 0
    %12 = vsyncpa [#allocation6], 0
    %13 = vsyncpa [#allocation4], 0
    // Predicated region
    $region2: #{tpu_custom_call.1} parent=1 // pred_check
      _
    $region3: #{tpu_custom_call.1} parent=1 // pred_check_branch
      %15 = sbr.rel (0) target = $region5
    $region4: #{tpu_custom_call.1} parent=1 // pred_region
      %17 = vsyncadd [#allocation3], 0
      %s18 = sshll.u32 %s0, 4
      %s19 = int_to_ptr.hbm [resolvable:$true] %s18
      %s20 = sshll.u32 [#allocation2], 4
      %s21 = int_to_ptr.vmem [resolvable:$true] %s20
      %26 = dma.hbm_to_vmem [thread:$0]  %s19, 4096, %s21, [#allocation3], 128, 128, 8
    $region5: #{tpu_custom_call.1} parent=1 // pred_fallthru
      _
    // Predicated region
    $region6: #{tpu_custom_call.1} parent=1 // pred_check
      _
    $region7: #{tpu_custom_call.1} parent=1 // pred_check_branch
      %28 = sbr.rel (0) target = $region9
    $region8: #{tpu_custom_call.1} parent=1 // pred_region
      %30 = vsyncadd [#allocation6], 0
      %s31 = sshll.u32 %s1, 4
      %s32 = int_to_ptr.hbm [resolvable:$true] %s31
      %s33 = sshll.u32 [#allocation5], 4
      %s34 = int_to_ptr.vmem [resolvable:$true] %s33
      %39 = dma.hbm_to_vmem [thread:$0]  %s32, 2048, %s34, [#allocation6], 64, 64, 4
    $region9: #{tpu_custom_call.1} parent=1 // pred_fallthru
      _
    // Predicated region
    $region10: #{tpu_custom_call.1} parent=1 // pred_check
      _
    $region11: #{tpu_custom_call.1} parent=1 // pred_check_branch
      %41 = sbr.rel (0) target = $region13
    $region12: #{tpu_custom_call.1} parent=1 // pred_region
      %43 = vsyncadd [#allocation6], 0
      %s44 = sshll.u32 %s2, 4
      %s45 = int_to_ptr.hbm [resolvable:$true] %s44
      %s46 = sshll.u32 [#allocation7], 4
      %s47 = int_to_ptr.vmem [resolvable:$true] %s46
      %52 = dma.hbm_to_vmem [thread:$0]  %s45, 1024, %s47, [#allocation6], 64, 64, 4
    $region13: #{tpu_custom_call.1} parent=1 // pred_fallthru
      _
    // Predicated region
    $region14: #{tpu_custom_call.1} parent=1 // pred_check
      _
    $region15: #{tpu_custom_call.1} parent=1 // pred_check_branch
      %54 = sbr.rel (0) target = $region17
    $region16: #{tpu_custom_call.1} parent=1 // pred_region
      _
    $region17: #{tpu_custom_call.1} parent=1 // pred_fallthru
      _
    // Predicated region
    $region18: #{tpu_custom_call.1} parent=1 // pred_check
      _
    $region19: #{tpu_custom_call.1} parent=1 // pred_check_branch
      %56 = sbr.rel (0) target = $region21
    $region20: #{tpu_custom_call.1} parent=1 // pred_region
      _
    $region21: #{tpu_custom_call.1} parent=1 // pred_fallthru
      _
    // Predicated region
    $region22: #{tpu_custom_call.1} parent=1 // pred_check
      _
    $region23: #{tpu_custom_call.1} parent=1 // pred_check_branch
      %58 = sbr.rel (0) target = $region25
    $region24: #{tpu_custom_call.1} parent=1 // pred_region
      _
    $region25: #{tpu_custom_call.1} parent=1 // pred_fallthru
      _
    // Predicated region
    $region26: #{tpu_custom_call.1} parent=1 // pred_check
      _
    $region27: #{tpu_custom_call.1} parent=1 // pred_check_branch
      %60 = sbr.rel (0) target = $region29
    $region28: #{tpu_custom_call.1} parent=1 // pred_region
      %62 = dma.done [#allocation3], 4096
    $region29: #{tpu_custom_call.1} parent=1 // pred_fallthru
      _
    // Predicated region
    $region30: #{tpu_custom_call.1} parent=1 // pred_check
      _
    $region31: #{tpu_custom_call.1} parent=1 // pred_check_branch
      %64 = sbr.rel (0) target = $region33
    $region32: #{tpu_custom_call.1} parent=1 // pred_region
      %66 = dma.done [#allocation6], 2048
    $region33: #{tpu_custom_call.1} parent=1 // pred_fallthru
      _
    // Predicated region
    $region34: #{tpu_custom_call.1} parent=1 // pred_check
      _
    $region35: #{tpu_custom_call.1} parent=1 // pred_check_branch
      %68 = sbr.rel (0) target = $region37
    $region36: #{tpu_custom_call.1} parent=1 // pred_region
      %70 = dma.done [#allocation6], 1024
    $region37: #{tpu_custom_call.1} parent=1 // pred_fallthru
      _
    %v71 = vld [vmem:[#allocation2] sm:$0xff]
    %v72 = vld [vmem:[#allocation2 + $0x8] sm:$0xff]
    %v73 = vld [vmem:[#allocation2 + $0x10] sm:$0xff]
    %v74 = vld [vmem:[#allocation2 + $0x18] sm:$0xff]
    %v75 = vld [vmem:[#allocation2 + $0x20] sm:$0xff]
    %v76 = vld [vmem:[#allocation2 + $0x28] sm:$0xff]
    %v77 = vld [vmem:[#allocation2 + $0x30] sm:$0xff]
    %v78 = vld [vmem:[#allocation2 + $0x38] sm:$0xff]
    %v79 = vld [vmem:[#allocation2 + $0x40] sm:$0xff]
    %v80 = vld [vmem:[#allocation2 + $0x48] sm:$0xff]
    %v81 = vld [vmem:[#allocation2 + $0x50] sm:$0xff]
    %v82 = vld [vmem:[#allocation2 + $0x58] sm:$0xff]
    %v83 = vld [vmem:[#allocation2 + $0x60] sm:$0xff]
    %v84 = vld [vmem:[#allocation2 + $0x68] sm:$0xff]
    %v85 = vld [vmem:[#allocation2 + $0x70] sm:$0xff]
    %v86 = vld [vmem:[#allocation2 + $0x78] sm:$0xff]
    %v87 = vld [vmem:[#allocation2 + $0x80] sm:$0xff]
    %v88 = vld [vmem:[#allocation2 + $0x88] sm:$0xff]
    %v89 = vld [vmem:[#allocation2 + $0x90] sm:$0xff]
    %v90 = vld [vmem:[#allocation2 + $0x98] sm:$0xff]
    %v91 = vld [vmem:[#allocation2 + $0xa0] sm:$0xff]
    %v92 = vld [vmem:[#allocation2 + $0xa8] sm:$0xff]
    %v93 = vld [vmem:[#allocation2 + $0xb0] sm:$0xff]
    %v94 = vld [vmem:[#allocation2 + $0xb8] sm:$0xff]
    %v95 = vld [vmem:[#allocation2 + $0xc0] sm:$0xff]
    %v96 = vld [vmem:[#allocation2 + $0xc8] sm:$0xff]
    %v97 = vld [vmem:[#allocation2 + $0xd0] sm:$0xff]
    %v98 = vld [vmem:[#allocation2 + $0xd8] sm:$0xff]
    %v99 = vld [vmem:[#allocation2 + $0xe0] sm:$0xff]
    %v100 = vld [vmem:[#allocation2 + $0xe8] sm:$0xff]
    %v101 = vld [vmem:[#allocation2 + $0xf0] sm:$0xff]
    %v102 = vld [vmem:[#allocation2 + $0xf8] sm:$0xff]
    %v103 = vld [vmem:[#allocation5] sm:$0xf]
    %v104 = vld [vmem:[#allocation5 + $0x4] sm:$0xf]
    %v105 = vld [vmem:[#allocation5 + $0x8] sm:$0xf]
    %v106 = vld [vmem:[#allocation5 + $0xc] sm:$0xf]
    %v107 = vld [vmem:[#allocation5 + $0x10] sm:$0xf]
    %v108 = vld [vmem:[#allocation5 + $0x14] sm:$0xf]
    %v109 = vld [vmem:[#allocation5 + $0x18] sm:$0xf]
    %v110 = vld [vmem:[#allocation5 + $0x1c] sm:$0xf]
    %v111 = vld [vmem:[#allocation5 + $0x20] sm:$0xf]
    %v112 = vld [vmem:[#allocation5 + $0x24] sm:$0xf]
    %v113 = vld [vmem:[#allocation5 + $0x28] sm:$0xf]
    %v114 = vld [vmem:[#allocation5 + $0x2c] sm:$0xf]
    %v115 = vld [vmem:[#allocation5 + $0x30] sm:$0xf]
    %v116 = vld [vmem:[#allocation5 + $0x34] sm:$0xf]
    %v117 = vld [vmem:[#allocation5 + $0x38] sm:$0xf]
    %v118 = vld [vmem:[#allocation5 + $0x3c] sm:$0xf]
    %v119 = vld [vmem:[#allocation5 + $0x40] sm:$0xf]
    %v120 = vld [vmem:[#allocation5 + $0x44] sm:$0xf]
    %v121 = vld [vmem:[#allocation5 + $0x48] sm:$0xf]
    %v122 = vld [vmem:[#allocation5 + $0x4c] sm:$0xf]
    %v123 = vld [vmem:[#allocation5 + $0x50] sm:$0xf]
    %v124 = vld [vmem:[#allocation5 + $0x54] sm:$0xf]
    %v125 = vld [vmem:[#allocation5 + $0x58] sm:$0xf]
    %v126 = vld [vmem:[#allocation5 + $0x5c] sm:$0xf]
    %v127 = vld [vmem:[#allocation5 + $0x60] sm:$0xf]
    %v128 = vld [vmem:[#allocation5 + $0x64] sm:$0xf]
    %v129 = vld [vmem:[#allocation5 + $0x68] sm:$0xf]
    %v130 = vld [vmem:[#allocation5 + $0x6c] sm:$0xf]
    %v131 = vld [vmem:[#allocation5 + $0x70] sm:$0xf]
    %v132 = vld [vmem:[#allocation5 + $0x74] sm:$0xf]
    %v133 = vld [vmem:[#allocation5 + $0x78] sm:$0xf]
    %v134 = vld [vmem:[#allocation5 + $0x7c] sm:$0xf]
    %v167 = vunpack.c.l.b16 %v71
    %v168 = vunpack.c.h.b16 %v71
    %v169 = vunpack.c.l.b16 %v72
    %v170 = vunpack.c.h.b16 %v72
    %v171 = vunpack.c.l.b16 %v73
    %v172 = vunpack.c.h.b16 %v73
    %v173 = vunpack.c.l.b16 %v74
    %v174 = vunpack.c.h.b16 %v74
    %v175 = vunpack.c.l.b16 %v75
    %v176 = vunpack.c.h.b16 %v75
    %v177 = vunpack.c.l.b16 %v76
    %v178 = vunpack.c.h.b16 %v76
    %v179 = vunpack.c.l.b16 %v77
    %v180 = vunpack.c.h.b16 %v77
    %v181 = vunpack.c.l.b16 %v78
    %v182 = vunpack.c.h.b16 %v78
    %v183 = vunpack.c.l.b16 %v79
    %v184 = vunpack.c.h.b16 %v79
    %v185 = vunpack.c.l.b16 %v80
    %v186 = vunpack.c.h.b16 %v80
    %v187 = vunpack.c.l.b16 %v81
    %v188 = vunpack.c.h.b16 %v81
    %v189 = vunpack.c.l.b16 %v82
    %v190 = vunpack.c.h.b16 %v82
    %v191 = vunpack.c.l.b16 %v83
    %v192 = vunpack.c.h.b16 %v83
    %v193 = vunpack.c.l.b16 %v84
    %v194 = vunpack.c.h.b16 %v84
    %v195 = vunpack.c.l.b16 %v85
    %v196 = vunpack.c.h.b16 %v85
    %v197 = vunpack.c.l.b16 %v86
    %v198 = vunpack.c.h.b16 %v86
    %v199 = vunpack.c.l.b16 %v87
    %v200 = vunpack.c.h.b16 %v87
    %v201 = vunpack.c.l.b16 %v88
    %v202 = vunpack.c.h.b16 %v88
    %v203 = vunpack.c.l.b16 %v89
    %v204 = vunpack.c.h.b16 %v89
    %v205 = vunpack.c.l.b16 %v90
    %v206 = vunpack.c.h.b16 %v90
    %v207 = vunpack.c.l.b16 %v91
    %v208 = vunpack.c.h.b16 %v91
    %v209 = vunpack.c.l.b16 %v92
    %v210 = vunpack.c.h.b16 %v92
    %v211 = vunpack.c.l.b16 %v93
    %v212 = vunpack.c.h.b16 %v93
    %v213 = vunpack.c.l.b16 %v94
    %v214 = vunpack.c.h.b16 %v94
    %v215 = vunpack.c.l.b16 %v95
    %v216 = vunpack.c.h.b16 %v95
    %v217 = vunpack.c.l.b16 %v96
    %v218 = vunpack.c.h.b16 %v96
    %v219 = vunpack.c.l.b16 %v97
    %v220 = vunpack.c.h.b16 %v97
    %v221 = vunpack.c.l.b16 %v98
    %v222 = vunpack.c.h.b16 %v98
    %v223 = vunpack.c.l.b16 %v99
    %v224 = vunpack.c.h.b16 %v99
    %v225 = vunpack.c.l.b16 %v100
    %v226 = vunpack.c.h.b16 %v100
    %v227 = vunpack.c.l.b16 %v101
    %v228 = vunpack.c.h.b16 %v101
    %v229 = vunpack.c.l.b16 %v102
    %v230 = vunpack.c.h.b16 %v102
    %v231 = vpack.c.b16 %v169, %v167
    %v232 = vpack.c.b16 %v170, %v168
    %v233 = vpack.c.b16 %v173, %v171
    %v234 = vpack.c.b16 %v174, %v172
    %v235 = vpack.c.b16 %v177, %v175
    %v236 = vpack.c.b16 %v178, %v176
    %v237 = vpack.c.b16 %v181, %v179
    %v238 = vpack.c.b16 %v182, %v180
    %v239 = vpack.c.b16 %v185, %v183
    %v240 = vpack.c.b16 %v186, %v184
    %v241 = vpack.c.b16 %v189, %v187
    %v242 = vpack.c.b16 %v190, %v188
    %v243 = vpack.c.b16 %v193, %v191
    %v244 = vpack.c.b16 %v194, %v192
    %v245 = vpack.c.b16 %v197, %v195
    %v246 = vpack.c.b16 %v198, %v196
    %v247 = vpack.c.b16 %v201, %v199
    %v248 = vpack.c.b16 %v202, %v200
    %v249 = vpack.c.b16 %v205, %v203
    %v250 = vpack.c.b16 %v206, %v204
    %v251 = vpack.c.b16 %v209, %v207
    %v252 = vpack.c.b16 %v210, %v208
    %v253 = vpack.c.b16 %v213, %v211
    %v254 = vpack.c.b16 %v214, %v212
    %v255 = vpack.c.b16 %v217, %v215
    %v256 = vpack.c.b16 %v218, %v216
    %v257 = vpack.c.b16 %v221, %v219
    %v258 = vpack.c.b16 %v222, %v220
    %v259 = vpack.c.b16 %v225, %v223
    %v260 = vpack.c.b16 %v226, %v224
    %v261 = vpack.c.b16 %v229, %v227
    %v262 = vpack.c.b16 %v230, %v228
    %v327 = vunpack.c.l.b16 %v103
    %v328 = vunpack.c.l.b16 %v104
    %v329 = vunpack.c.l.b16 %v105
    %v330 = vunpack.c.l.b16 %v106
    %v331 = vunpack.c.l.b16 %v107
    %v332 = vunpack.c.l.b16 %v108
    %v333 = vunpack.c.l.b16 %v109
    %v334 = vunpack.c.l.b16 %v110
    %v335 = vunpack.c.l.b16 %v111
    %v336 = vunpack.c.l.b16 %v112
    %v337 = vunpack.c.l.b16 %v113
    %v338 = vunpack.c.l.b16 %v114
    %v339 = vunpack.c.l.b16 %v115
    %v340 = vunpack.c.l.b16 %v116
    %v341 = vunpack.c.l.b16 %v117
    %v342 = vunpack.c.l.b16 %v118
    %v343 = vunpack.c.l.b16 %v119
    %v344 = vunpack.c.l.b16 %v120
    %v345 = vunpack.c.l.b16 %v121
    %v346 = vunpack.c.l.b16 %v122
    %v347 = vunpack.c.l.b16 %v123
    %v348 = vunpack.c.l.b16 %v124
    %v349 = vunpack.c.l.b16 %v125
    %v350 = vunpack.c.l.b16 %v126
    %v351 = vunpack.c.l.b16 %v127
    %v352 = vunpack.c.l.b16 %v128
    %v353 = vunpack.c.l.b16 %v129
    %v354 = vunpack.c.l.b16 %v130
    %v355 = vunpack.c.l.b16 %v131
    %v356 = vunpack.c.l.b16 %v132
    %v357 = vunpack.c.l.b16 %v133
    %v358 = vunpack.c.l.b16 %v134
    %v359 = vpack.c.b16 %v328, %v327
    %v360 = vpack.c.b16 %v330, %v329
    %v361 = vpack.c.b16 %v332, %v331
    %v362 = vpack.c.b16 %v334, %v333
    %v363 = vpack.c.b16 %v336, %v335
    %v364 = vpack.c.b16 %v338, %v337
    %v365 = vpack.c.b16 %v340, %v339
    %v366 = vpack.c.b16 %v342, %v341
    %v367 = vpack.c.b16 %v344, %v343
    %v368 = vpack.c.b16 %v346, %v345
    %v369 = vpack.c.b16 %v348, %v347
    %v370 = vpack.c.b16 %v350, %v349
    %v371 = vpack.c.b16 %v352, %v351
    %v372 = vpack.c.b16 %v354, %v353
    %v373 = vpack.c.b16 %v356, %v355
    %v374 = vpack.c.b16 %v358, %v357
    %391 = vmatpush.bf16.msra.mxu0 %v366
    %392 = vmatpush.bf16.msra.mxu0 %v365
    %393 = vmatpush.bf16.msra.mxu0 %v364
    %394 = vmatpush.bf16.msra.mxu0 %v363
    %395 = vmatpush.bf16.msra.mxu0 %v362
    %396 = vmatpush.bf16.msra.mxu0 %v361
    %397 = vmatpush.bf16.msra.mxu0 %v360
    %398 = vmatpush.bf16.msra.mxu0 %v359
    %399 = vmatmul.bf16.gmra.mxu0 %v231
    %v400 = vpop.f32.mrf.mxu0
    %v401 = vadd.f32 0.0, %v400
    %v402 = vpop.f32.mrf.mxu0
    %v403 = vadd.f32 0.0, %v402
    %404 = vmatmul.bf16.gmra.mxu0 %v233
    %v405 = vpop.f32.mrf.mxu0
    %v406 = vadd.f32 0.0, %v405
    %v407 = vpop.f32.mrf.mxu0
    %v408 = vadd.f32 0.0, %v407
    %409 = vmatmul.bf16.gmra.mxu0 %v235
    %v410 = vpop.f32.mrf.mxu0
    %v411 = vadd.f32 0.0, %v410
    %v412 = vpop.f32.mrf.mxu0
    %v413 = vadd.f32 0.0, %v412
    %414 = vmatmul.bf16.gmra.mxu0 %v237
    %v415 = vpop.f32.mrf.mxu0
    %v416 = vadd.f32 0.0, %v415
    %v417 = vpop.f32.mrf.mxu0
    %v418 = vadd.f32 0.0, %v417
    %419 = vmatmul.bf16.gmra.mxu0 %v239
    %v420 = vpop.f32.mrf.mxu0
    %v421 = vadd.f32 0.0, %v420
    %v422 = vpop.f32.mrf.mxu0
    %v423 = vadd.f32 0.0, %v422
    %424 = vmatmul.bf16.gmra.mxu0 %v241
    %v425 = vpop.f32.mrf.mxu0
    %v426 = vadd.f32 0.0, %v425
    %v427 = vpop.f32.mrf.mxu0
    %v428 = vadd.f32 0.0, %v427
    %429 = vmatmul.bf16.gmra.mxu0 %v243
    %v430 = vpop.f32.mrf.mxu0
    %v431 = vadd.f32 0.0, %v430
    %v432 = vpop.f32.mrf.mxu0
    %v433 = vadd.f32 0.0, %v432
    %434 = vmatmul.bf16.gmra.mxu0 %v245
    %v435 = vpop.f32.mrf.mxu0
    %v436 = vadd.f32 0.0, %v435
    %v437 = vpop.f32.mrf.mxu0
    %v438 = vadd.f32 0.0, %v437
    %439 = vmatmul.bf16.gmra.mxu0 %v247
    %v440 = vpop.f32.mrf.mxu0
    %v441 = vadd.f32 0.0, %v440
    %v442 = vpop.f32.mrf.mxu0
    %v443 = vadd.f32 0.0, %v442
    %444 = vmatmul.bf16.gmra.mxu0 %v249
    %v445 = vpop.f32.mrf.mxu0
    %v446 = vadd.f32 0.0, %v445
    %v447 = vpop.f32.mrf.mxu0
    %v448 = vadd.f32 0.0, %v447
    %449 = vmatmul.bf16.gmra.mxu0 %v251
    %v450 = vpop.f32.mrf.mxu0
    %v451 = vadd.f32 0.0, %v450
    %v452 = vpop.f32.mrf.mxu0
    %v453 = vadd.f32 0.0, %v452
    %454 = vmatmul.bf16.gmra.mxu0 %v253
    %v455 = vpop.f32.mrf.mxu0
    %v456 = vadd.f32 0.0, %v455
    %v457 = vpop.f32.mrf.mxu0
    %v458 = vadd.f32 0.0, %v457
    %459 = vmatmul.bf16.gmra.mxu0 %v255
    %v460 = vpop.f32.mrf.mxu0
    %v461 = vadd.f32 0.0, %v460
    %v462 = vpop.f32.mrf.mxu0
    %v463 = vadd.f32 0.0, %v462
    %464 = vmatmul.bf16.gmra.mxu0 %v257
    %v465 = vpop.f32.mrf.mxu0
    %v466 = vadd.f32 0.0, %v465
    %v467 = vpop.f32.mrf.mxu0
    %v468 = vadd.f32 0.0, %v467
    %469 = vmatmul.bf16.gmra.mxu0 %v259
    %v470 = vpop.f32.mrf.mxu0
    %v471 = vadd.f32 0.0, %v470
    %v472 = vpop.f32.mrf.mxu0
    %v473 = vadd.f32 0.0, %v472
    %474 = vmatmul.bf16.gmra.mxu0 %v261
    %v475 = vpop.f32.mrf.mxu0
    %v476 = vadd.f32 0.0, %v475
    %v477 = vpop.f32.mrf.mxu0
    %v478 = vadd.f32 0.0, %v477
    %479 = vdwg.mxu0
    %480 = vmatpush.bf16.msra.mxu0 %v374
    %481 = vmatpush.bf16.msra.mxu0 %v373
    %482 = vmatpush.bf16.msra.mxu0 %v372
    %483 = vmatpush.bf16.msra.mxu0 %v371
    %484 = vmatpush.bf16.msra.mxu0 %v370
    %485 = vmatpush.bf16.msra.mxu0 %v369
    %486 = vmatpush.bf16.msra.mxu0 %v368
    %487 = vmatpush.bf16.msra.mxu0 %v367
    %488 = vmatmul.bf16.gmra.mxu0 %v232
    %v489 = vpop.f32.mrf.mxu0
    %v490 = vadd.f32 %v401, %v489
    %v491 = vpop.f32.mrf.mxu0
    %v492 = vadd.f32 %v403, %v491
    %493 = vmatmul.bf16.gmra.mxu0 %v234
    %v494 = vpop.f32.mrf.mxu0
    %v495 = vadd.f32 %v406, %v494
    %v496 = vpop.f32.mrf.mxu0
    %v497 = vadd.f32 %v408, %v496
    %498 = vmatmul.bf16.gmra.mxu0 %v236
    %v499 = vpop.f32.mrf.mxu0
    %v500 = vadd.f32 %v411, %v499
    %v501 = vpop.f32.mrf.mxu0
    %v502 = vadd.f32 %v413, %v501
    %503 = vmatmul.bf16.gmra.mxu0 %v238
    %v504 = vpop.f32.mrf.mxu0
    %v505 = vadd.f32 %v416, %v504
    %v506 = vpop.f32.mrf.mxu0
    %v507 = vadd.f32 %v418, %v506
    %508 = vmatmul.bf16.gmra.mxu0 %v240
    %v509 = vpop.f32.mrf.mxu0
    %v510 = vadd.f32 %v421, %v509
    %v511 = vpop.f32.mrf.mxu0
    %v512 = vadd.f32 %v423, %v511
    %513 = vmatmul.bf16.gmra.mxu0 %v242
    %v514 = vpop.f32.mrf.mxu0
    %v515 = vadd.f32 %v426, %v514
    %v516 = vpop.f32.mrf.mxu0
    %v517 = vadd.f32 %v428, %v516
    %518 = vmatmul.bf16.gmra.mxu0 %v244
    %v519 = vpop.f32.mrf.mxu0
    %v520 = vadd.f32 %v431, %v519
    %v521 = vpop.f32.mrf.mxu0
    %v522 = vadd.f32 %v433, %v521
    %523 = vmatmul.bf16.gmra.mxu0 %v246
    %v524 = vpop.f32.mrf.mxu0
    %v525 = vadd.f32 %v436, %v524
    %v526 = vpop.f32.mrf.mxu0
    %v527 = vadd.f32 %v438, %v526
    %528 = vmatmul.bf16.gmra.mxu0 %v248
    %v529 = vpop.f32.mrf.mxu0
    %v530 = vadd.f32 %v441, %v529
    %v531 = vpop.f32.mrf.mxu0
    %v532 = vadd.f32 %v443, %v531
    %533 = vmatmul.bf16.gmra.mxu0 %v250
    %v534 = vpop.f32.mrf.mxu0
    %v535 = vadd.f32 %v446, %v534
    %v536 = vpop.f32.mrf.mxu0
    %v537 = vadd.f32 %v448, %v536
    %538 = vmatmul.bf16.gmra.mxu0 %v252
    %v539 = vpop.f32.mrf.mxu0
    %v540 = vadd.f32 %v451, %v539
    %v541 = vpop.f32.mrf.mxu0
    %v542 = vadd.f32 %v453, %v541
    %543 = vmatmul.bf16.gmra.mxu0 %v254
    %v544 = vpop.f32.mrf.mxu0
    %v545 = vadd.f32 %v456, %v544
    %v546 = vpop.f32.mrf.mxu0
    %v547 = vadd.f32 %v458, %v546
    %548 = vmatmul.bf16.gmra.mxu0 %v256
    %v549 = vpop.f32.mrf.mxu0
    %v550 = vadd.f32 %v461, %v549
    %v551 = vpop.f32.mrf.mxu0
    %v552 = vadd.f32 %v463, %v551
    %553 = vmatmul.bf16.gmra.mxu0 %v258
    %v554 = vpop.f32.mrf.mxu0
    %v555 = vadd.f32 %v466, %v554
    %v556 = vpop.f32.mrf.mxu0
    %v557 = vadd.f32 %v468, %v556
    %558 = vmatmul.bf16.gmra.mxu0 %v260
    %v559 = vpop.f32.mrf.mxu0
    %v560 = vadd.f32 %v471, %v559
    %v561 = vpop.f32.mrf.mxu0
    %v562 = vadd.f32 %v473, %v561
    %563 = vmatmul.bf16.gmra.mxu0 %v262
    %v564 = vpop.f32.mrf.mxu0
    %v565 = vadd.f32 %v476, %v564
    %v566 = vpop.f32.mrf.mxu0
    %v567 = vadd.f32 %v478, %v566
    %568 = vdwg.mxu0
    %v569 = vld [vmem:[%s3] sm:$0x1]
    %v571 = vperm.slane %v569, 0
    %v573 = vmul.f32 %v490, %v571
    %v574 = vmul.f32 %v492, %v571
    %v575 = vmul.f32 %v495, %v571
    %v576 = vmul.f32 %v497, %v571
    %v577 = vmul.f32 %v500, %v571
    %v578 = vmul.f32 %v502, %v571
    %v579 = vmul.f32 %v505, %v571
    %v580 = vmul.f32 %v507, %v571
    %v581 = vmul.f32 %v510, %v571
    %v582 = vmul.f32 %v512, %v571
    %v583 = vmul.f32 %v515, %v571
    %v584 = vmul.f32 %v517, %v571
    %v585 = vmul.f32 %v520, %v571
    %v586 = vmul.f32 %v522, %v571
    %v587 = vmul.f32 %v525, %v571
    %v588 = vmul.f32 %v527, %v571
    %v589 = vmul.f32 %v530, %v571
    %v590 = vmul.f32 %v532, %v571
    %v591 = vmul.f32 %v535, %v571
    %v592 = vmul.f32 %v537, %v571
    %v593 = vmul.f32 %v540, %v571
    %v594 = vmul.f32 %v542, %v571
    %v595 = vmul.f32 %v545, %v571
    %v596 = vmul.f32 %v547, %v571
    %v597 = vmul.f32 %v550, %v571
    %v598 = vmul.f32 %v552, %v571
    %v599 = vmul.f32 %v555, %v571
    %v600 = vmul.f32 %v557, %v571
    %v601 = vmul.f32 %v560, %v571
    %v602 = vmul.f32 %v562, %v571
    %v603 = vmul.f32 %v565, %v571
    %v604 = vmul.f32 %v567, %v571
    %v605 = vld [vmem:[%s4] sm:$0x1]
    %v607 = vperm.slane %v605, 0
    %v609 = vadd.f32 %v573, %v607
    %v610 = vadd.f32 %v574, %v607
    %v611 = vadd.f32 %v575, %v607
    %v612 = vadd.f32 %v576, %v607
    %v613 = vadd.f32 %v577, %v607
    %v614 = vadd.f32 %v578, %v607
    %v615 = vadd.f32 %v579, %v607
    %v616 = vadd.f32 %v580, %v607
    %v617 = vadd.f32 %v581, %v607
    %v618 = vadd.f32 %v582, %v607
    %v619 = vadd.f32 %v583, %v607
    %v620 = vadd.f32 %v584, %v607
    %v621 = vadd.f32 %v585, %v607
    %v622 = vadd.f32 %v586, %v607
    %v623 = vadd.f32 %v587, %v607
    %v624 = vadd.f32 %v588, %v607
    %v625 = vadd.f32 %v589, %v607
    %v626 = vadd.f32 %v590, %v607
    %v627 = vadd.f32 %v591, %v607
    %v628 = vadd.f32 %v592, %v607
    %v629 = vadd.f32 %v593, %v607
    %v630 = vadd.f32 %v594, %v607
    %v631 = vadd.f32 %v595, %v607
    %v632 = vadd.f32 %v596, %v607
    %v633 = vadd.f32 %v597, %v607
    %v634 = vadd.f32 %v598, %v607
    %v635 = vadd.f32 %v599, %v607
    %v636 = vadd.f32 %v600, %v607
    %v637 = vadd.f32 %v601, %v607
    %v638 = vadd.f32 %v602, %v607
    %v639 = vadd.f32 %v603, %v607
    %v640 = vadd.f32 %v604, %v607
    %vm641 = vcmp.gt.f32.partialorder %v609, 0.0
    %vm642 = vcmp.gt.f32.partialorder %v610, 0.0
    %vm643 = vcmp.gt.f32.partialorder %v611, 0.0
    %vm644 = vcmp.gt.f32.partialorder %v612, 0.0
    %vm645 = vcmp.gt.f32.partialorder %v613, 0.0
    %vm646 = vcmp.gt.f32.partialorder %v614, 0.0
    %vm647 = vcmp.gt.f32.partialorder %v615, 0.0
    %vm648 = vcmp.gt.f32.partialorder %v616, 0.0
    %vm649 = vcmp.gt.f32.partialorder %v617, 0.0
    %vm650 = vcmp.gt.f32.partialorder %v618, 0.0
    %vm651 = vcmp.gt.f32.partialorder %v619, 0.0
    %vm652 = vcmp.gt.f32.partialorder %v620, 0.0
    %vm653 = vcmp.gt.f32.partialorder %v621, 0.0
    %vm654 = vcmp.gt.f32.partialorder %v622, 0.0
    %vm655 = vcmp.gt.f32.partialorder %v623, 0.0
    %vm656 = vcmp.gt.f32.partialorder %v624, 0.0
    %vm657 = vcmp.gt.f32.partialorder %v625, 0.0
    %vm658 = vcmp.gt.f32.partialorder %v626, 0.0
    %vm659 = vcmp.gt.f32.partialorder %v627, 0.0
    %vm660 = vcmp.gt.f32.partialorder %v628, 0.0
    %vm661 = vcmp.gt.f32.partialorder %v629, 0.0
    %vm662 = vcmp.gt.f32.partialorder %v630, 0.0
    %vm663 = vcmp.gt.f32.partialorder %v631, 0.0
    %vm664 = vcmp.gt.f32.partialorder %v632, 0.0
    %vm665 = vcmp.gt.f32.partialorder %v633, 0.0
    %vm666 = vcmp.gt.f32.partialorder %v634, 0.0
    %vm667 = vcmp.gt.f32.partialorder %v635, 0.0
    %vm668 = vcmp.gt.f32.partialorder %v636, 0.0
    %vm669 = vcmp.gt.f32.partialorder %v637, 0.0
    %vm670 = vcmp.gt.f32.partialorder %v638, 0.0
    %vm671 = vcmp.gt.f32.partialorder %v639, 0.0
    %vm672 = vcmp.gt.f32.partialorder %v640, 0.0
    %v673 = vmul.f32 %v609, 0.01
    %v674 = vmul.f32 %v610, 0.01
    %v675 = vmul.f32 %v611, 0.01
    %v676 = vmul.f32 %v612, 0.01
    %v677 = vmul.f32 %v613, 0.01
    %v678 = vmul.f32 %v614, 0.01
    %v679 = vmul.f32 %v615, 0.01
    %v680 = vmul.f32 %v616, 0.01
    %v681 = vmul.f32 %v617, 0.01
    %v682 = vmul.f32 %v618, 0.01
    %v683 = vmul.f32 %v619, 0.01
    %v684 = vmul.f32 %v620, 0.01
    %v685 = vmul.f32 %v621, 0.01
    %v686 = vmul.f32 %v622, 0.01
    %v687 = vmul.f32 %v623, 0.01
    %v688 = vmul.f32 %v624, 0.01
    %v689 = vmul.f32 %v625, 0.01
    %v690 = vmul.f32 %v626, 0.01
    %v691 = vmul.f32 %v627, 0.01
    %v692 = vmul.f32 %v628, 0.01
    %v693 = vmul.f32 %v629, 0.01
    %v694 = vmul.f32 %v630, 0.01
    %v695 = vmul.f32 %v631, 0.01
    %v696 = vmul.f32 %v632, 0.01
    %v697 = vmul.f32 %v633, 0.01
    %v698 = vmul.f32 %v634, 0.01
    %v699 = vmul.f32 %v635, 0.01
    %v700 = vmul.f32 %v636, 0.01
    %v701 = vmul.f32 %v637, 0.01
    %v702 = vmul.f32 %v638, 0.01
    %v703 = vmul.f32 %v639, 0.01
    %v704 = vmul.f32 %v640, 0.01
    %v705 = vsel %vm641, %v609, %v673
    %v706 = vsel %vm642, %v610, %v674
    %v707 = vsel %vm643, %v611, %v675
    %v708 = vsel %vm644, %v612, %v676
    %v709 = vsel %vm645, %v613, %v677
    %v710 = vsel %vm646, %v614, %v678
    %v711 = vsel %vm647, %v615, %v679
    %v712 = vsel %vm648, %v616, %v680
    %v713 = vsel %vm649, %v617, %v681
    %v714 = vsel %vm650, %v618, %v682
    %v715 = vsel %vm651, %v619, %v683
    %v716 = vsel %vm652, %v620, %v684
    %v717 = vsel %vm653, %v621, %v685
    %v718 = vsel %vm654, %v622, %v686
    %v719 = vsel %vm655, %v623, %v687
    %v720 = vsel %vm656, %v624, %v688
    %v721 = vsel %vm657, %v625, %v689
    %v722 = vsel %vm658, %v626, %v690
    %v723 = vsel %vm659, %v627, %v691
    %v724 = vsel %vm660, %v628, %v692
    %v725 = vsel %vm661, %v629, %v693
    %v726 = vsel %vm662, %v630, %v694
    %v727 = vsel %vm663, %v631, %v695
    %v728 = vsel %vm664, %v632, %v696
    %v729 = vsel %vm665, %v633, %v697
    %v730 = vsel %vm666, %v634, %v698
    %v731 = vsel %vm667, %v635, %v699
    %v732 = vsel %vm668, %v636, %v700
    %v733 = vsel %vm669, %v637, %v701
    %v734 = vsel %vm670, %v638, %v702
    %v735 = vsel %vm671, %v639, %v703
    %v736 = vsel %vm672, %v640, %v704
    %v737 = vpack.c.bf16 %v706, %v705
    %v738 = vpack.c.bf16 %v708, %v707
    %v739 = vpack.c.bf16 %v710, %v709
    %v740 = vpack.c.bf16 %v712, %v711
    %v741 = vpack.c.bf16 %v714, %v713
    %v742 = vpack.c.bf16 %v716, %v715
    %v743 = vpack.c.bf16 %v718, %v717
    %v744 = vpack.c.bf16 %v720, %v719
    %v745 = vpack.c.bf16 %v722, %v721
    %v746 = vpack.c.bf16 %v724, %v723
    %v747 = vpack.c.bf16 %v726, %v725
    %v748 = vpack.c.bf16 %v728, %v727
    %v749 = vpack.c.bf16 %v730, %v729
    %v750 = vpack.c.bf16 %v732, %v731
    %v751 = vpack.c.bf16 %v734, %v733
    %v752 = vpack.c.bf16 %v736, %v735
    %v753 = vld [vmem:[#allocation7] sm:$0xf]
    %v754 = vld [vmem:[#allocation7 + $0x4] sm:$0xf]
    %v755 = vld [vmem:[#allocation7 + $0x8] sm:$0xf]
    %v756 = vld [vmem:[#allocation7 + $0xc] sm:$0xf]
    %v757 = vld [vmem:[#allocation7 + $0x10] sm:$0xf]
    %v758 = vld [vmem:[#allocation7 + $0x14] sm:$0xf]
    %v759 = vld [vmem:[#allocation7 + $0x18] sm:$0xf]
    %v760 = vld [vmem:[#allocation7 + $0x1c] sm:$0xf]
    %v761 = vld [vmem:[#allocation7 + $0x20] sm:$0xf]
    %v762 = vld [vmem:[#allocation7 + $0x24] sm:$0xf]
    %v763 = vld [vmem:[#allocation7 + $0x28] sm:$0xf]
    %v764 = vld [vmem:[#allocation7 + $0x2c] sm:$0xf]
    %v765 = vld [vmem:[#allocation7 + $0x30] sm:$0xf]
    %v766 = vld [vmem:[#allocation7 + $0x34] sm:$0xf]
    %v767 = vld [vmem:[#allocation7 + $0x38] sm:$0xf]
    %v768 = vld [vmem:[#allocation7 + $0x3c] sm:$0xf]
    %v785 = vunpack.c.l.b16 %v753
    %v786 = vunpack.c.l.b16 %v754
    %v787 = vunpack.c.l.b16 %v755
    %v788 = vunpack.c.l.b16 %v756
    %v789 = vunpack.c.l.b16 %v757
    %v790 = vunpack.c.l.b16 %v758
    %v791 = vunpack.c.l.b16 %v759
    %v792 = vunpack.c.l.b16 %v760
    %v793 = vunpack.c.l.b16 %v761
    %v794 = vunpack.c.l.b16 %v762
    %v795 = vunpack.c.l.b16 %v763
    %v796 = vunpack.c.l.b16 %v764
    %v797 = vunpack.c.l.b16 %v765
    %v798 = vunpack.c.l.b16 %v766
    %v799 = vunpack.c.l.b16 %v767
    %v800 = vunpack.c.l.b16 %v768
    %v801 = vpack.c.b16 %v786, %v785
    %v802 = vpack.c.b16 %v788, %v787
    %v803 = vpack.c.b16 %v790, %v789
    %v804 = vpack.c.b16 %v792, %v791
    %v805 = vpack.c.b16 %v794, %v793
    %v806 = vpack.c.b16 %v796, %v795
    %v807 = vpack.c.b16 %v798, %v797
    %v808 = vpack.c.b16 %v800, %v799
    %817 = vmatpush.bf16.msra.mxu0 %v808
    %818 = vmatpush.bf16.msra.mxu0 %v807
    %819 = vmatpush.bf16.msra.mxu0 %v806
    %820 = vmatpush.bf16.msra.mxu0 %v805
    %821 = vmatpush.bf16.msra.mxu0 %v804
    %822 = vmatpush.bf16.msra.mxu0 %v803
    %823 = vmatpush.bf16.msra.mxu0 %v802
    %824 = vmatpush.bf16.msra.mxu0 %v801
    %825 = vmatmul.bf16.gmra.mxu0 %v737
    %v826 = vpop.f32.mrf.mxu0
    %v827 = vadd.f32 0.0, %v826
    %v828 = vpop.f32.mrf.mxu0
    %v829 = vadd.f32 0.0, %v828
    %830 = vmatmul.bf16.gmra.mxu0 %v738
    %v831 = vpop.f32.mrf.mxu0
    %v832 = vadd.f32 0.0, %v831
    %v833 = vpop.f32.mrf.mxu0
    %v834 = vadd.f32 0.0, %v833
    %835 = vmatmul.bf16.gmra.mxu0 %v739
    %v836 = vpop.f32.mrf.mxu0
    %v837 = vadd.f32 0.0, %v836
    %v838 = vpop.f32.mrf.mxu0
    %v839 = vadd.f32 0.0, %v838
    %840 = vmatmul.bf16.gmra.mxu0 %v740
    %v841 = vpop.f32.mrf.mxu0
    %v842 = vadd.f32 0.0, %v841
    %v843 = vpop.f32.mrf.mxu0
    %v844 = vadd.f32 0.0, %v843
    %845 = vmatmul.bf16.gmra.mxu0 %v741
    %v846 = vpop.f32.mrf.mxu0
    %v847 = vadd.f32 0.0, %v846
    %v848 = vpop.f32.mrf.mxu0
    %v849 = vadd.f32 0.0, %v848
    %850 = vmatmul.bf16.gmra.mxu0 %v742
    %v851 = vpop.f32.mrf.mxu0
    %v852 = vadd.f32 0.0, %v851
    %v853 = vpop.f32.mrf.mxu0
    %v854 = vadd.f32 0.0, %v853
    %855 = vmatmul.bf16.gmra.mxu0 %v743
    %v856 = vpop.f32.mrf.mxu0
    %v857 = vadd.f32 0.0, %v856
    %v858 = vpop.f32.mrf.mxu0
    %v859 = vadd.f32 0.0, %v858
    %860 = vmatmul.bf16.gmra.mxu0 %v744
    %v861 = vpop.f32.mrf.mxu0
    %v862 = vadd.f32 0.0, %v861
    %v863 = vpop.f32.mrf.mxu0
    %v864 = vadd.f32 0.0, %v863
    %865 = vmatmul.bf16.gmra.mxu0 %v745
    %v866 = vpop.f32.mrf.mxu0
    %v867 = vadd.f32 0.0, %v866
    %v868 = vpop.f32.mrf.mxu0
    %v869 = vadd.f32 0.0, %v868
    %870 = vmatmul.bf16.gmra.mxu0 %v746
    %v871 = vpop.f32.mrf.mxu0
    %v872 = vadd.f32 0.0, %v871
    %v873 = vpop.f32.mrf.mxu0
    %v874 = vadd.f32 0.0, %v873
    %875 = vmatmul.bf16.gmra.mxu0 %v747
    %v876 = vpop.f32.mrf.mxu0
    %v877 = vadd.f32 0.0, %v876
    %v878 = vpop.f32.mrf.mxu0
    %v879 = vadd.f32 0.0, %v878
    %880 = vmatmul.bf16.gmra.mxu0 %v748
    %v881 = vpop.f32.mrf.mxu0
    %v882 = vadd.f32 0.0, %v881
    %v883 = vpop.f32.mrf.mxu0
    %v884 = vadd.f32 0.0, %v883
    %885 = vmatmul.bf16.gmra.mxu0 %v749
    %v886 = vpop.f32.mrf.mxu0
    %v887 = vadd.f32 0.0, %v886
    %v888 = vpop.f32.mrf.mxu0
    %v889 = vadd.f32 0.0, %v888
    %890 = vmatmul.bf16.gmra.mxu0 %v750
    %v891 = vpop.f32.mrf.mxu0
    %v892 = vadd.f32 0.0, %v891
    %v893 = vpop.f32.mrf.mxu0
    %v894 = vadd.f32 0.0, %v893
    %895 = vmatmul.bf16.gmra.mxu0 %v751
    %v896 = vpop.f32.mrf.mxu0
    %v897 = vadd.f32 0.0, %v896
    %v898 = vpop.f32.mrf.mxu0
    %v899 = vadd.f32 0.0, %v898
    %900 = vmatmul.bf16.gmra.mxu0 %v752
    %v901 = vpop.f32.mrf.mxu0
    %v902 = vadd.f32 0.0, %v901
    %v903 = vpop.f32.mrf.mxu0
    %v904 = vadd.f32 0.0, %v903
    %905 = vdwg.mxu0
    %v906 = vpack.c.bf16 %v829, %v827
    %v907 = vpack.c.bf16 %v834, %v832
    %v908 = vpack.c.bf16 %v839, %v837
    %v909 = vpack.c.bf16 %v844, %v842
    %v910 = vpack.c.bf16 %v849, %v847
    %v911 = vpack.c.bf16 %v854, %v852
    %v912 = vpack.c.bf16 %v859, %v857
    %v913 = vpack.c.bf16 %v864, %v862
    %v914 = vpack.c.bf16 %v869, %v867
    %v915 = vpack.c.bf16 %v874, %v872
    %v916 = vpack.c.bf16 %v879, %v877
    %v917 = vpack.c.bf16 %v884, %v882
    %v918 = vpack.c.bf16 %v889, %v887
    %v919 = vpack.c.bf16 %v894, %v892
    %v920 = vpack.c.bf16 %v899, %v897
    %v921 = vpack.c.bf16 %v904, %v902
    %v922 = vld [vmem:[%s5] sm:$0x1]
    %v924 = vperm.slane %v922, 0
    %926 = vmatpush.bf16.msra.mxu0 %v913
    %927 = vmatpush.bf16.msra.mxu0 %v912
    %928 = vmatpush.bf16.msra.mxu0 %v911
    %929 = vmatpush.bf16.msra.mxu0 %v910
    %930 = vmatpush.bf16.msra.mxu0 %v909
    %931 = vmatpush.bf16.msra.mxu0 %v908
    %932 = vmatpush.bf16.msra.mxu0 %v907
    %933 = vmatpush.bf16.msra.mxu0 %v906
    %934 = vmatmul.bf16.gmra.mxu0 %v231
    %v935 = vpop.f32.mrf.mxu0
    %v936 = vadd.f32 %v924, %v935
    %v937 = vpop.f32.mrf.mxu0
    %v938 = vadd.f32 %v924, %v937
    %939 = vmatmul.bf16.gmra.mxu0 %v233
    %v940 = vpop.f32.mrf.mxu0
    %v941 = vadd.f32 %v924, %v940
    %v942 = vpop.f32.mrf.mxu0
    %v943 = vadd.f32 %v924, %v942
    %944 = vmatmul.bf16.gmra.mxu0 %v235
    %v945 = vpop.f32.mrf.mxu0
    %v946 = vadd.f32 %v924, %v945
    %v947 = vpop.f32.mrf.mxu0
    %v948 = vadd.f32 %v924, %v947
    %949 = vmatmul.bf16.gmra.mxu0 %v237
    %v950 = vpop.f32.mrf.mxu0
    %v951 = vadd.f32 %v924, %v950
    %v952 = vpop.f32.mrf.mxu0
    %v953 = vadd.f32 %v924, %v952
    %954 = vmatmul.bf16.gmra.mxu0 %v239
    %v955 = vpop.f32.mrf.mxu0
    %v956 = vadd.f32 %v924, %v955
    %v957 = vpop.f32.mrf.mxu0
    %v958 = vadd.f32 %v924, %v957
    %959 = vmatmul.bf16.gmra.mxu0 %v241
    %v960 = vpop.f32.mrf.mxu0
    %v961 = vadd.f32 %v924, %v960
    %v962 = vpop.f32.mrf.mxu0
    %v963 = vadd.f32 %v924, %v962
    %964 = vmatmul.bf16.gmra.mxu0 %v243
    %v965 = vpop.f32.mrf.mxu0
    %v966 = vadd.f32 %v924, %v965
    %v967 = vpop.f32.mrf.mxu0
    %v968 = vadd.f32 %v924, %v967
    %969 = vmatmul.bf16.gmra.mxu0 %v245
    %v970 = vpop.f32.mrf.mxu0
    %v971 = vadd.f32 %v924, %v970
    %v972 = vpop.f32.mrf.mxu0
    %v973 = vadd.f32 %v924, %v972
    %974 = vmatmul.bf16.gmra.mxu0 %v247
    %v975 = vpop.f32.mrf.mxu0
    %v976 = vadd.f32 %v924, %v975
    %v977 = vpop.f32.mrf.mxu0
    %v978 = vadd.f32 %v924, %v977
    %979 = vmatmul.bf16.gmra.mxu0 %v249
    %v980 = vpop.f32.mrf.mxu0
    %v981 = vadd.f32 %v924, %v980
    %v982 = vpop.f32.mrf.mxu0
    %v983 = vadd.f32 %v924, %v982
    %984 = vmatmul.bf16.gmra.mxu0 %v251
    %v985 = vpop.f32.mrf.mxu0
    %v986 = vadd.f32 %v924, %v985
    %v987 = vpop.f32.mrf.mxu0
    %v988 = vadd.f32 %v924, %v987
    %989 = vmatmul.bf16.gmra.mxu0 %v253
    %v990 = vpop.f32.mrf.mxu0
    %v991 = vadd.f32 %v924, %v990
    %v992 = vpop.f32.mrf.mxu0
    %v993 = vadd.f32 %v924, %v992
    %994 = vmatmul.bf16.gmra.mxu0 %v255
    %v995 = vpop.f32.mrf.mxu0
    %v996 = vadd.f32 %v924, %v995
    %v997 = vpop.f32.mrf.mxu0
    %v998 = vadd.f32 %v924, %v997
    %999 = vmatmul.bf16.gmra.mxu0 %v257
    %v1000 = vpop.f32.mrf.mxu0
    %v1001 = vadd.f32 %v924, %v1000
    %v1002 = vpop.f32.mrf.mxu0
    %v1003 = vadd.f32 %v924, %v1002
    %1004 = vmatmul.bf16.gmra.mxu0 %v259
    %v1005 = vpop.f32.mrf.mxu0
    %v1006 = vadd.f32 %v924, %v1005
    %v1007 = vpop.f32.mrf.mxu0
    %v1008 = vadd.f32 %v924, %v1007
    %1009 = vmatmul.bf16.gmra.mxu0 %v261
    %v1010 = vpop.f32.mrf.mxu0
    %v1011 = vadd.f32 %v924, %v1010
    %v1012 = vpop.f32.mrf.mxu0
    %v1013 = vadd.f32 %v924, %v1012
    %1014 = vdwg.mxu0
    %1015 = vmatpush.bf16.msra.mxu0 %v921
    %1016 = vmatpush.bf16.msra.mxu0 %v920
    %1017 = vmatpush.bf16.msra.mxu0 %v919
    %1018 = vmatpush.bf16.msra.mxu0 %v918
    %1019 = vmatpush.bf16.msra.mxu0 %v917
    %1020 = vmatpush.bf16.msra.mxu0 %v916
    %1021 = vmatpush.bf16.msra.mxu0 %v915
    %1022 = vmatpush.bf16.msra.mxu0 %v914
    %1023 = vmatmul.bf16.gmra.mxu0 %v232
    %v1024 = vpop.f32.mrf.mxu0
    %v1025 = vadd.f32 %v936, %v1024
    %v1026 = vpop.f32.mrf.mxu0
    %v1027 = vadd.f32 %v938, %v1026
    %1028 = vmatmul.bf16.gmra.mxu0 %v234
    %v1029 = vpop.f32.mrf.mxu0
    %v1030 = vadd.f32 %v941, %v1029
    %v1031 = vpop.f32.mrf.mxu0
    %v1032 = vadd.f32 %v943, %v1031
    %1033 = vmatmul.bf16.gmra.mxu0 %v236
    %v1034 = vpop.f32.mrf.mxu0
    %v1035 = vadd.f32 %v946, %v1034
    %v1036 = vpop.f32.mrf.mxu0
    %v1037 = vadd.f32 %v948, %v1036
    %1038 = vmatmul.bf16.gmra.mxu0 %v238
    %v1039 = vpop.f32.mrf.mxu0
    %v1040 = vadd.f32 %v951, %v1039
    %v1041 = vpop.f32.mrf.mxu0
    %v1042 = vadd.f32 %v953, %v1041
    %1043 = vmatmul.bf16.gmra.mxu0 %v240
    %v1044 = vpop.f32.mrf.mxu0
    %v1045 = vadd.f32 %v956, %v1044
    %v1046 = vpop.f32.mrf.mxu0
    %v1047 = vadd.f32 %v958, %v1046
    %1048 = vmatmul.bf16.gmra.mxu0 %v242
    %v1049 = vpop.f32.mrf.mxu0
    %v1050 = vadd.f32 %v961, %v1049
    %v1051 = vpop.f32.mrf.mxu0
    %v1052 = vadd.f32 %v963, %v1051
    %1053 = vmatmul.bf16.gmra.mxu0 %v244
    %v1054 = vpop.f32.mrf.mxu0
    %v1055 = vadd.f32 %v966, %v1054
    %v1056 = vpop.f32.mrf.mxu0
    %v1057 = vadd.f32 %v968, %v1056
    %1058 = vmatmul.bf16.gmra.mxu0 %v246
    %v1059 = vpop.f32.mrf.mxu0
    %v1060 = vadd.f32 %v971, %v1059
    %v1061 = vpop.f32.mrf.mxu0
    %v1062 = vadd.f32 %v973, %v1061
    %1063 = vmatmul.bf16.gmra.mxu0 %v248
    %v1064 = vpop.f32.mrf.mxu0
    %v1065 = vadd.f32 %v976, %v1064
    %v1066 = vpop.f32.mrf.mxu0
    %v1067 = vadd.f32 %v978, %v1066
    %1068 = vmatmul.bf16.gmra.mxu0 %v250
    %v1069 = vpop.f32.mrf.mxu0
    %v1070 = vadd.f32 %v981, %v1069
    %v1071 = vpop.f32.mrf.mxu0
    %v1072 = vadd.f32 %v983, %v1071
    %1073 = vmatmul.bf16.gmra.mxu0 %v252
    %v1074 = vpop.f32.mrf.mxu0
    %v1075 = vadd.f32 %v986, %v1074
    %v1076 = vpop.f32.mrf.mxu0
    %v1077 = vadd.f32 %v988, %v1076
    %1078 = vmatmul.bf16.gmra.mxu0 %v254
    %v1079 = vpop.f32.mrf.mxu0
    %v1080 = vadd.f32 %v991, %v1079
    %v1081 = vpop.f32.mrf.mxu0
    %v1082 = vadd.f32 %v993, %v1081
    %1083 = vmatmul.bf16.gmra.mxu0 %v256
    %v1084 = vpop.f32.mrf.mxu0
    %v1085 = vadd.f32 %v996, %v1084
    %v1086 = vpop.f32.mrf.mxu0
    %v1087 = vadd.f32 %v998, %v1086
    %1088 = vmatmul.bf16.gmra.mxu0 %v258
    %v1089 = vpop.f32.mrf.mxu0
    %v1090 = vadd.f32 %v1001, %v1089
    %v1091 = vpop.f32.mrf.mxu0
    %v1092 = vadd.f32 %v1003, %v1091
    %1093 = vmatmul.bf16.gmra.mxu0 %v260
    %v1094 = vpop.f32.mrf.mxu0
    %v1095 = vadd.f32 %v1006, %v1094
    %v1096 = vpop.f32.mrf.mxu0
    %v1097 = vadd.f32 %v1008, %v1096
    %1098 = vmatmul.bf16.gmra.mxu0 %v262
    %v1099 = vpop.f32.mrf.mxu0
    %v1100 = vadd.f32 %v1011, %v1099
    %v1101 = vpop.f32.mrf.mxu0
    %v1102 = vadd.f32 %v1013, %v1101
    %1103 = vdwg.mxu0
    %1104 = vmax.xlane.f32.xlu0 %v1025
    %v1105 = vpop.xlane.xlu0 %1104
    %1106 = vmax.xlane.f32.xlu0 %v1027
    %v1107 = vpop.xlane.xlu0 %1106
    %1108 = vmax.xlane.f32.xlu0 %v1030
    %v1109 = vpop.xlane.xlu0 %1108
    %1110 = vmax.xlane.f32.xlu0 %v1032
    %v1111 = vpop.xlane.xlu0 %1110
    %1112 = vmax.xlane.f32.xlu0 %v1035
    %v1113 = vpop.xlane.xlu0 %1112
    %1114 = vmax.xlane.f32.xlu0 %v1037
    %v1115 = vpop.xlane.xlu0 %1114
    %1116 = vmax.xlane.f32.xlu0 %v1040
    %v1117 = vpop.xlane.xlu0 %1116
    %1118 = vmax.xlane.f32.xlu0 %v1042
    %v1119 = vpop.xlane.xlu0 %1118
    %1120 = vmax.xlane.f32.xlu0 %v1045
    %v1121 = vpop.xlane.xlu0 %1120
    %1122 = vmax.xlane.f32.xlu0 %v1047
    %v1123 = vpop.xlane.xlu0 %1122
    %1124 = vmax.xlane.f32.xlu0 %v1050
    %v1125 = vpop.xlane.xlu0 %1124
    %1126 = vmax.xlane.f32.xlu0 %v1052
    %v1127 = vpop.xlane.xlu0 %1126
    %1128 = vmax.xlane.f32.xlu0 %v1055
    %v1129 = vpop.xlane.xlu0 %1128
    %1130 = vmax.xlane.f32.xlu0 %v1057
    %v1131 = vpop.xlane.xlu0 %1130
    %1132 = vmax.xlane.f32.xlu0 %v1060
    %v1133 = vpop.xlane.xlu0 %1132
    %1134 = vmax.xlane.f32.xlu0 %v1062
    %v1135 = vpop.xlane.xlu0 %1134
    %1136 = vmax.xlane.f32.xlu0 %v1065
    %v1137 = vpop.xlane.xlu0 %1136
    %1138 = vmax.xlane.f32.xlu0 %v1067
    %v1139 = vpop.xlane.xlu0 %1138
    %1140 = vmax.xlane.f32.xlu0 %v1070
    %v1141 = vpop.xlane.xlu0 %1140
    %1142 = vmax.xlane.f32.xlu0 %v1072
    %v1143 = vpop.xlane.xlu0 %1142
    %1144 = vmax.xlane.f32.xlu0 %v1075
    %v1145 = vpop.xlane.xlu0 %1144
    %1146 = vmax.xlane.f32.xlu0 %v1077
    %v1147 = vpop.xlane.xlu0 %1146
    %1148 = vmax.xlane.f32.xlu0 %v1080
    %v1149 = vpop.xlane.xlu0 %1148
    %1150 = vmax.xlane.f32.xlu0 %v1082
    %v1151 = vpop.xlane.xlu0 %1150
    %1152 = vmax.xlane.f32.xlu0 %v1085
    %v1153 = vpop.xlane.xlu0 %1152
    %1154 = vmax.xlane.f32.xlu0 %v1087
    %v1155 = vpop.xlane.xlu0 %1154
    %1156 = vmax.xlane.f32.xlu0 %v1090
    %v1157 = vpop.xlane.xlu0 %1156
    %1158 = vmax.xlane.f32.xlu0 %v1092
    %v1159 = vpop.xlane.xlu0 %1158
    %1160 = vmax.xlane.f32.xlu0 %v1095
    %v1161 = vpop.xlane.xlu0 %1160
    %1162 = vmax.xlane.f32.xlu0 %v1097
    %v1163 = vpop.xlane.xlu0 %1162
    %1164 = vmax.xlane.f32.xlu0 %v1100
    %v1165 = vpop.xlane.xlu0 %1164
    %1166 = vmax.xlane.f32.xlu0 %v1102
    %v1167 = vpop.xlane.xlu0 %1166
    %v1168 = vsub.f32 %v1025, %v1105
    %v1169 = vsub.f32 %v1027, %v1107
    %v1170 = vsub.f32 %v1030, %v1109
    %v1171 = vsub.f32 %v1032, %v1111
    %v1172 = vsub.f32 %v1035, %v1113
    %v1173 = vsub.f32 %v1037, %v1115
    %v1174 = vsub.f32 %v1040, %v1117
    %v1175 = vsub.f32 %v1042, %v1119
    %v1176 = vsub.f32 %v1045, %v1121
    %v1177 = vsub.f32 %v1047, %v1123
    %v1178 = vsub.f32 %v1050, %v1125
    %v1179 = vsub.f32 %v1052, %v1127
    %v1180 = vsub.f32 %v1055, %v1129
    %v1181 = vsub.f32 %v1057, %v1131
    %v1182 = vsub.f32 %v1060, %v1133
    %v1183 = vsub.f32 %v1062, %v1135
    %v1184 = vsub.f32 %v1065, %v1137
    %v1185 = vsub.f32 %v1067, %v1139
    %v1186 = vsub.f32 %v1070, %v1141
    %v1187 = vsub.f32 %v1072, %v1143
    %v1188 = vsub.f32 %v1075, %v1145
    %v1189 = vsub.f32 %v1077, %v1147
    %v1190 = vsub.f32 %v1080, %v1149
    %v1191 = vsub.f32 %v1082, %v1151
    %v1192 = vsub.f32 %v1085, %v1153
    %v1193 = vsub.f32 %v1087, %v1155
    %v1194 = vsub.f32 %v1090, %v1157
    %v1195 = vsub.f32 %v1092, %v1159
    %v1196 = vsub.f32 %v1095, %v1161
    %v1197 = vsub.f32 %v1097, %v1163
    %v1198 = vsub.f32 %v1100, %v1165
    %v1199 = vsub.f32 %v1102, %v1167
    %v1200 = vmul.f32 %v1168, 1.442695
    %v1201 = vpow.pop %v1200
    %v1202 = vmul.f32 %v1169, 1.442695
    %v1203 = vpow.pop %v1202
    %v1204 = vmul.f32 %v1170, 1.442695
    %v1205 = vpow.pop %v1204
    %v1206 = vmul.f32 %v1171, 1.442695
    %v1207 = vpow.pop %v1206
    %v1208 = vmul.f32 %v1172, 1.442695
    %v1209 = vpow.pop %v1208
    %v1210 = vmul.f32 %v1173, 1.442695
    %v1211 = vpow.pop %v1210
    %v1212 = vmul.f32 %v1174, 1.442695
    %v1213 = vpow.pop %v1212
    %v1214 = vmul.f32 %v1175, 1.442695
    %v1215 = vpow.pop %v1214
    %v1216 = vmul.f32 %v1176, 1.442695
    %v1217 = vpow.pop %v1216
    %v1218 = vmul.f32 %v1177, 1.442695
    %v1219 = vpow.pop %v1218
    %v1220 = vmul.f32 %v1178, 1.442695
    %v1221 = vpow.pop %v1220
    %v1222 = vmul.f32 %v1179, 1.442695
    %v1223 = vpow.pop %v1222
    %v1224 = vmul.f32 %v1180, 1.442695
    %v1225 = vpow.pop %v1224
    %v1226 = vmul.f32 %v1181, 1.442695
    %v1227 = vpow.pop %v1226
    %v1228 = vmul.f32 %v1182, 1.442695
    %v1229 = vpow.pop %v1228
    %v1230 = vmul.f32 %v1183, 1.442695
    %v1231 = vpow.pop %v1230
    %v1232 = vmul.f32 %v1184, 1.442695
    %v1233 = vpow.pop %v1232
    %v1234 = vmul.f32 %v1185, 1.442695
    %v1235 = vpow.pop %v1234
    %v1236 = vmul.f32 %v1186, 1.442695
    %v1237 = vpow.pop %v1236
    %v1238 = vmul.f32 %v1187, 1.442695
    %v1239 = vpow.pop %v1238
    %v1240 = vmul.f32 %v1188, 1.442695
    %v1241 = vpow.pop %v1240
    %v1242 = vmul.f32 %v1189, 1.442695
    %v1243 = vpow.pop %v1242
    %v1244 = vmul.f32 %v1190, 1.442695
    %v1245 = vpow.pop %v1244
    %v1246 = vmul.f32 %v1191, 1.442695
    %v1247 = vpow.pop %v1246
    %v1248 = vmul.f32 %v1192, 1.442695
    %v1249 = vpow.pop %v1248
    %v1250 = vmul.f32 %v1193, 1.442695
    %v1251 = vpow.pop %v1250
    %v1252 = vmul.f32 %v1194, 1.442695
    %v1253 = vpow.pop %v1252
    %v1254 = vmul.f32 %v1195, 1.442695
    %v1255 = vpow.pop %v1254
    %v1256 = vmul.f32 %v1196, 1.442695
    %v1257 = vpow.pop %v1256
    %v1258 = vmul.f32 %v1197, 1.442695
    %v1259 = vpow.pop %v1258
    %v1260 = vmul.f32 %v1198, 1.442695
    %v1261 = vpow.pop %v1260
    %v1262 = vmul.f32 %v1199, 1.442695
    %v1263 = vpow.pop %v1262
    %1264 = vadd.xlane.f32.xlu0 %v1201
    %v1265 = vpop.xlane.xlu0 %1264
    %1266 = vadd.xlane.f32.xlu0 %v1203
    %v1267 = vpop.xlane.xlu0 %1266
    %1268 = vadd.xlane.f32.xlu0 %v1205
    %v1269 = vpop.xlane.xlu0 %1268
    %1270 = vadd.xlane.f32.xlu0 %v1207
    %v1271 = vpop.xlane.xlu0 %1270
    %1272 = vadd.xlane.f32.xlu0 %v1209
    %v1273 = vpop.xlane.xlu0 %1272
    %1274 = vadd.xlane.f32.xlu0 %v1211
    %v1275 = vpop.xlane.xlu0 %1274
    %1276 = vadd.xlane.f32.xlu0 %v1213
    %v1277 = vpop.xlane.xlu0 %1276
    %1278 = vadd.xlane.f32.xlu0 %v1215
    %v1279 = vpop.xlane.xlu0 %1278
    %1280 = vadd.xlane.f32.xlu0 %v1217
    %v1281 = vpop.xlane.xlu0 %1280
    %1282 = vadd.xlane.f32.xlu0 %v1219
    %v1283 = vpop.xlane.xlu0 %1282
    %1284 = vadd.xlane.f32.xlu0 %v1221
    %v1285 = vpop.xlane.xlu0 %1284
    %1286 = vadd.xlane.f32.xlu0 %v1223
    %v1287 = vpop.xlane.xlu0 %1286
    %1288 = vadd.xlane.f32.xlu0 %v1225
    %v1289 = vpop.xlane.xlu0 %1288
    %1290 = vadd.xlane.f32.xlu0 %v1227
    %v1291 = vpop.xlane.xlu0 %1290
    %1292 = vadd.xlane.f32.xlu0 %v1229
    %v1293 = vpop.xlane.xlu0 %1292
    %1294 = vadd.xlane.f32.xlu0 %v1231
    %v1295 = vpop.xlane.xlu0 %1294
    %1296 = vadd.xlane.f32.xlu0 %v1233
    %v1297 = vpop.xlane.xlu0 %1296
    %1298 = vadd.xlane.f32.xlu0 %v1235
    %v1299 = vpop.xlane.xlu0 %1298
    %1300 = vadd.xlane.f32.xlu0 %v1237
    %v1301 = vpop.xlane.xlu0 %1300
    %1302 = vadd.xlane.f32.xlu0 %v1239
    %v1303 = vpop.xlane.xlu0 %1302
    %1304 = vadd.xlane.f32.xlu0 %v1241
    %v1305 = vpop.xlane.xlu0 %1304
    %1306 = vadd.xlane.f32.xlu0 %v1243
    %v1307 = vpop.xlane.xlu0 %1306
    %1308 = vadd.xlane.f32.xlu0 %v1245
    %v1309 = vpop.xlane.xlu0 %1308
    %1310 = vadd.xlane.f32.xlu0 %v1247
    %v1311 = vpop.xlane.xlu0 %1310
    %1312 = vadd.xlane.f32.xlu0 %v1249
    %v1313 = vpop.xlane.xlu0 %1312
    %1314 = vadd.xlane.f32.xlu0 %v1251
    %v1315 = vpop.xlane.xlu0 %1314
    %1316 = vadd.xlane.f32.xlu0 %v1253
    %v1317 = vpop.xlane.xlu0 %1316
    %1318 = vadd.xlane.f32.xlu0 %v1255
    %v1319 = vpop.xlane.xlu0 %1318
    %1320 = vadd.xlane.f32.xlu0 %v1257
    %v1321 = vpop.xlane.xlu0 %1320
    %1322 = vadd.xlane.f32.xlu0 %v1259
    %v1323 = vpop.xlane.xlu0 %1322
    %1324 = vadd.xlane.f32.xlu0 %v1261
    %v1325 = vpop.xlane.xlu0 %1324
    %1326 = vadd.xlane.f32.xlu0 %v1263
    %v1327 = vpop.xlane.xlu0 %1326
    %v1328 = vrcp.pop %v1265
    %v1329 = vmul.f32 %v1265, %v1328
    %v1330 = vsub.f32 1.0, %v1329
    %v1331 = vmul.f32 %v1328, %v1330
    %v1332 = vadd.f32 %v1328, %v1331
    %vm1333 = vweird.f32 %v1265
    %vm1334 = vweird.f32 %v1328
    %vm1335 = vmor %vm1333, %vm1334
    %v1336 = vsel %vm1335, %v1328, %v1332
    %v1337 = vand.u32 2147483647, %v1265
    %vm1338 = vcmp.eq.f32.partialorder %v1337, 8.507059e+37
    %v1339 = vand.u32 %v1265, 2147483648
    %v1340 = vor.u32 1.1754944e-38, %v1339
    %v1341 = vsel %vm1338, %v1340, %v1336
    %v1342 = vmul.f32 %v1201, %v1341
    %v1343 = vrcp.pop %v1267
    %v1344 = vmul.f32 %v1267, %v1343
    %v1345 = vsub.f32 1.0, %v1344
    %v1346 = vmul.f32 %v1343, %v1345
    %v1347 = vadd.f32 %v1343, %v1346
    %vm1348 = vweird.f32 %v1267
    %vm1349 = vweird.f32 %v1343
    %vm1350 = vmor %vm1348, %vm1349
    %v1351 = vsel %vm1350, %v1343, %v1347
    %v1352 = vand.u32 2147483647, %v1267
    %vm1353 = vcmp.eq.f32.partialorder %v1352, 8.507059e+37
    %v1354 = vand.u32 %v1267, 2147483648
    %v1355 = vor.u32 1.1754944e-38, %v1354
    %v1356 = vsel %vm1353, %v1355, %v1351
    %v1357 = vmul.f32 %v1203, %v1356
    %v1358 = vrcp.pop %v1269
    %v1359 = vmul.f32 %v1269, %v1358
    %v1360 = vsub.f32 1.0, %v1359
    %v1361 = vmul.f32 %v1358, %v1360
    %v1362 = vadd.f32 %v1358, %v1361
    %vm1363 = vweird.f32 %v1269
    %vm1364 = vweird.f32 %v1358
    %vm1365 = vmor %vm1363, %vm1364
    %v1366 = vsel %vm1365, %v1358, %v1362
    %v1367 = vand.u32 2147483647, %v1269
    %vm1368 = vcmp.eq.f32.partialorder %v1367, 8.507059e+37
    %v1369 = vand.u32 %v1269, 2147483648
    %v1370 = vor.u32 1.1754944e-38, %v1369
    %v1371 = vsel %vm1368, %v1370, %v1366
    %v1372 = vmul.f32 %v1205, %v1371
    %v1373 = vrcp.pop %v1271
    %v1374 = vmul.f32 %v1271, %v1373
    %v1375 = vsub.f32 1.0, %v1374
    %v1376 = vmul.f32 %v1373, %v1375
    %v1377 = vadd.f32 %v1373, %v1376
    %vm1378 = vweird.f32 %v1271
    %vm1379 = vweird.f32 %v1373
    %vm1380 = vmor %vm1378, %vm1379
    %v1381 = vsel %vm1380, %v1373, %v1377
    %v1382 = vand.u32 2147483647, %v1271
    %vm1383 = vcmp.eq.f32.partialorder %v1382, 8.507059e+37
    %v1384 = vand.u32 %v1271, 2147483648
    %v1385 = vor.u32 1.1754944e-38, %v1384
    %v1386 = vsel %vm1383, %v1385, %v1381
    %v1387 = vmul.f32 %v1207, %v1386
    %v1388 = vrcp.pop %v1273
    %v1389 = vmul.f32 %v1273, %v1388
    %v1390 = vsub.f32 1.0, %v1389
    %v1391 = vmul.f32 %v1388, %v1390
    %v1392 = vadd.f32 %v1388, %v1391
    %vm1393 = vweird.f32 %v1273
    %vm1394 = vweird.f32 %v1388
    %vm1395 = vmor %vm1393, %vm1394
    %v1396 = vsel %vm1395, %v1388, %v1392
    %v1397 = vand.u32 2147483647, %v1273
    %vm1398 = vcmp.eq.f32.partialorder %v1397, 8.507059e+37
    %v1399 = vand.u32 %v1273, 2147483648
    %v1400 = vor.u32 1.1754944e-38, %v1399
    %v1401 = vsel %vm1398, %v1400, %v1396
    %v1402 = vmul.f32 %v1209, %v1401
    %v1403 = vrcp.pop %v1275
    %v1404 = vmul.f32 %v1275, %v1403
    %v1405 = vsub.f32 1.0, %v1404
    %v1406 = vmul.f32 %v1403, %v1405
    %v1407 = vadd.f32 %v1403, %v1406
    %vm1408 = vweird.f32 %v1275
    %vm1409 = vweird.f32 %v1403
    %vm1410 = vmor %vm1408, %vm1409
    %v1411 = vsel %vm1410, %v1403, %v1407
    %v1412 = vand.u32 2147483647, %v1275
    %vm1413 = vcmp.eq.f32.partialorder %v1412, 8.507059e+37
    %v1414 = vand.u32 %v1275, 2147483648
    %v1415 = vor.u32 1.1754944e-38, %v1414
    %v1416 = vsel %vm1413, %v1415, %v1411
    %v1417 = vmul.f32 %v1211, %v1416
    %v1418 = vrcp.pop %v1277
    %v1419 = vmul.f32 %v1277, %v1418
    %v1420 = vsub.f32 1.0, %v1419
    %v1421 = vmul.f32 %v1418, %v1420
    %v1422 = vadd.f32 %v1418, %v1421
    %vm1423 = vweird.f32 %v1277
    %vm1424 = vweird.f32 %v1418
    %vm1425 = vmor %vm1423, %vm1424
    %v1426 = vsel %vm1425, %v1418, %v1422
    %v1427 = vand.u32 2147483647, %v1277
    %vm1428 = vcmp.eq.f32.partialorder %v1427, 8.507059e+37
    %v1429 = vand.u32 %v1277, 2147483648
    %v1430 = vor.u32 1.1754944e-38, %v1429
    %v1431 = vsel %vm1428, %v1430, %v1426
    %v1432 = vmul.f32 %v1213, %v1431
    %v1433 = vrcp.pop %v1279
    %v1434 = vmul.f32 %v1279, %v1433
    %v1435 = vsub.f32 1.0, %v1434
    %v1436 = vmul.f32 %v1433, %v1435
    %v1437 = vadd.f32 %v1433, %v1436
    %vm1438 = vweird.f32 %v1279
    %vm1439 = vweird.f32 %v1433
    %vm1440 = vmor %vm1438, %vm1439
    %v1441 = vsel %vm1440, %v1433, %v1437
    %v1442 = vand.u32 2147483647, %v1279
    %vm1443 = vcmp.eq.f32.partialorder %v1442, 8.507059e+37
    %v1444 = vand.u32 %v1279, 2147483648
    %v1445 = vor.u32 1.1754944e-38, %v1444
    %v1446 = vsel %vm1443, %v1445, %v1441
    %v1447 = vmul.f32 %v1215, %v1446
    %v1448 = vrcp.pop %v1281
    %v1449 = vmul.f32 %v1281, %v1448
    %v1450 = vsub.f32 1.0, %v1449
    %v1451 = vmul.f32 %v1448, %v1450
    %v1452 = vadd.f32 %v1448, %v1451
    %vm1453 = vweird.f32 %v1281
    %vm1454 = vweird.f32 %v1448
    %vm1455 = vmor %vm1453, %vm1454
    %v1456 = vsel %vm1455, %v1448, %v1452
    %v1457 = vand.u32 2147483647, %v1281
    %vm1458 = vcmp.eq.f32.partialorder %v1457, 8.507059e+37
    %v1459 = vand.u32 %v1281, 2147483648
    %v1460 = vor.u32 1.1754944e-38, %v1459
    %v1461 = vsel %vm1458, %v1460, %v1456
    %v1462 = vmul.f32 %v1217, %v1461
    %v1463 = vrcp.pop %v1283
    %v1464 = vmul.f32 %v1283, %v1463
    %v1465 = vsub.f32 1.0, %v1464
    %v1466 = vmul.f32 %v1463, %v1465
    %v1467 = vadd.f32 %v1463, %v1466
    %vm1468 = vweird.f32 %v1283
    %vm1469 = vweird.f32 %v1463
    %vm1470 = vmor %vm1468, %vm1469
    %v1471 = vsel %vm1470, %v1463, %v1467
    %v1472 = vand.u32 2147483647, %v1283
    %vm1473 = vcmp.eq.f32.partialorder %v1472, 8.507059e+37
    %v1474 = vand.u32 %v1283, 2147483648
    %v1475 = vor.u32 1.1754944e-38, %v1474
    %v1476 = vsel %vm1473, %v1475, %v1471
    %v1477 = vmul.f32 %v1219, %v1476
    %v1478 = vrcp.pop %v1285
    %v1479 = vmul.f32 %v1285, %v1478
    %v1480 = vsub.f32 1.0, %v1479
    %v1481 = vmul.f32 %v1478, %v1480
    %v1482 = vadd.f32 %v1478, %v1481
    %vm1483 = vweird.f32 %v1285
    %vm1484 = vweird.f32 %v1478
    %vm1485 = vmor %vm1483, %vm1484
    %v1486 = vsel %vm1485, %v1478, %v1482
    %v1487 = vand.u32 2147483647, %v1285
    %vm1488 = vcmp.eq.f32.partialorder %v1487, 8.507059e+37
    %v1489 = vand.u32 %v1285, 2147483648
    %v1490 = vor.u32 1.1754944e-38, %v1489
    %v1491 = vsel %vm1488, %v1490, %v1486
    %v1492 = vmul.f32 %v1221, %v1491
    %v1493 = vrcp.pop %v1287
    %v1494 = vmul.f32 %v1287, %v1493
    %v1495 = vsub.f32 1.0, %v1494
    %v1496 = vmul.f32 %v1493, %v1495
    %v1497 = vadd.f32 %v1493, %v1496
    %vm1498 = vweird.f32 %v1287
    %vm1499 = vweird.f32 %v1493
    %vm1500 = vmor %vm1498, %vm1499
    %v1501 = vsel %vm1500, %v1493, %v1497
    %v1502 = vand.u32 2147483647, %v1287
    %vm1503 = vcmp.eq.f32.partialorder %v1502, 8.507059e+37
    %v1504 = vand.u32 %v1287, 2147483648
    %v1505 = vor.u32 1.1754944e-38, %v1504
    %v1506 = vsel %vm1503, %v1505, %v1501
    %v1507 = vmul.f32 %v1223, %v1506
    %v1508 = vrcp.pop %v1289
    %v1509 = vmul.f32 %v1289, %v1508
    %v1510 = vsub.f32 1.0, %v1509
    %v1511 = vmul.f32 %v1508, %v1510
    %v1512 = vadd.f32 %v1508, %v1511
    %vm1513 = vweird.f32 %v1289
    %vm1514 = vweird.f32 %v1508
    %vm1515 = vmor %vm1513, %vm1514
    %v1516 = vsel %vm1515, %v1508, %v1512
    %v1517 = vand.u32 2147483647, %v1289
    %vm1518 = vcmp.eq.f32.partialorder %v1517, 8.507059e+37
    %v1519 = vand.u32 %v1289, 2147483648
    %v1520 = vor.u32 1.1754944e-38, %v1519
    %v1521 = vsel %vm1518, %v1520, %v1516
    %v1522 = vmul.f32 %v1225, %v1521
    %v1523 = vrcp.pop %v1291
    %v1524 = vmul.f32 %v1291, %v1523
    %v1525 = vsub.f32 1.0, %v1524
    %v1526 = vmul.f32 %v1523, %v1525
    %v1527 = vadd.f32 %v1523, %v1526
    %vm1528 = vweird.f32 %v1291
    %vm1529 = vweird.f32 %v1523
    %vm1530 = vmor %vm1528, %vm1529
    %v1531 = vsel %vm1530, %v1523, %v1527
    %v1532 = vand.u32 2147483647, %v1291
    %vm1533 = vcmp.eq.f32.partialorder %v1532, 8.507059e+37
    %v1534 = vand.u32 %v1291, 2147483648
    %v1535 = vor.u32 1.1754944e-38, %v1534
    %v1536 = vsel %vm1533, %v1535, %v1531
    %v1537 = vmul.f32 %v1227, %v1536
    %v1538 = vrcp.pop %v1293
    %v1539 = vmul.f32 %v1293, %v1538
    %v1540 = vsub.f32 1.0, %v1539
    %v1541 = vmul.f32 %v1538, %v1540
    %v1542 = vadd.f32 %v1538, %v1541
    %vm1543 = vweird.f32 %v1293
    %vm1544 = vweird.f32 %v1538
    %vm1545 = vmor %vm1543, %vm1544
    %v1546 = vsel %vm1545, %v1538, %v1542
    %v1547 = vand.u32 2147483647, %v1293
    %vm1548 = vcmp.eq.f32.partialorder %v1547, 8.507059e+37
    %v1549 = vand.u32 %v1293, 2147483648
    %v1550 = vor.u32 1.1754944e-38, %v1549
    %v1551 = vsel %vm1548, %v1550, %v1546
    %v1552 = vmul.f32 %v1229, %v1551
    %v1553 = vrcp.pop %v1295
    %v1554 = vmul.f32 %v1295, %v1553
    %v1555 = vsub.f32 1.0, %v1554
    %v1556 = vmul.f32 %v1553, %v1555
    %v1557 = vadd.f32 %v1553, %v1556
    %vm1558 = vweird.f32 %v1295
    %vm1559 = vweird.f32 %v1553
    %vm1560 = vmor %vm1558, %vm1559
    %v1561 = vsel %vm1560, %v1553, %v1557
    %v1562 = vand.u32 2147483647, %v1295
    %vm1563 = vcmp.eq.f32.partialorder %v1562, 8.507059e+37
    %v1564 = vand.u32 %v1295, 2147483648
    %v1565 = vor.u32 1.1754944e-38, %v1564
    %v1566 = vsel %vm1563, %v1565, %v1561
    %v1567 = vmul.f32 %v1231, %v1566
    %v1568 = vrcp.pop %v1297
    %v1569 = vmul.f32 %v1297, %v1568
    %v1570 = vsub.f32 1.0, %v1569
    %v1571 = vmul.f32 %v1568, %v1570
    %v1572 = vadd.f32 %v1568, %v1571
    %vm1573 = vweird.f32 %v1297
    %vm1574 = vweird.f32 %v1568
    %vm1575 = vmor %vm1573, %vm1574
    %v1576 = vsel %vm1575, %v1568, %v1572
    %v1577 = vand.u32 2147483647, %v1297
    %vm1578 = vcmp.eq.f32.partialorder %v1577, 8.507059e+37
    %v1579 = vand.u32 %v1297, 2147483648
    %v1580 = vor.u32 1.1754944e-38, %v1579
    %v1581 = vsel %vm1578, %v1580, %v1576
    %v1582 = vmul.f32 %v1233, %v1581
    %v1583 = vrcp.pop %v1299
    %v1584 = vmul.f32 %v1299, %v1583
    %v1585 = vsub.f32 1.0, %v1584
    %v1586 = vmul.f32 %v1583, %v1585
    %v1587 = vadd.f32 %v1583, %v1586
    %vm1588 = vweird.f32 %v1299
    %vm1589 = vweird.f32 %v1583
    %vm1590 = vmor %vm1588, %vm1589
    %v1591 = vsel %vm1590, %v1583, %v1587
    %v1592 = vand.u32 2147483647, %v1299
    %vm1593 = vcmp.eq.f32.partialorder %v1592, 8.507059e+37
    %v1594 = vand.u32 %v1299, 2147483648
    %v1595 = vor.u32 1.1754944e-38, %v1594
    %v1596 = vsel %vm1593, %v1595, %v1591
    %v1597 = vmul.f32 %v1235, %v1596
    %v1598 = vrcp.pop %v1301
    %v1599 = vmul.f32 %v1301, %v1598
    %v1600 = vsub.f32 1.0, %v1599
    %v1601 = vmul.f32 %v1598, %v1600
    %v1602 = vadd.f32 %v1598, %v1601
    %vm1603 = vweird.f32 %v1301
    %vm1604 = vweird.f32 %v1598
    %vm1605 = vmor %vm1603, %vm1604
    %v1606 = vsel %vm1605, %v1598, %v1602
    %v1607 = vand.u32 2147483647, %v1301
    %vm1608 = vcmp.eq.f32.partialorder %v1607, 8.507059e+37
    %v1609 = vand.u32 %v1301, 2147483648
    %v1610 = vor.u32 1.1754944e-38, %v1609
    %v1611 = vsel %vm1608, %v1610, %v1606
    %v1612 = vmul.f32 %v1237, %v1611
    %v1613 = vrcp.pop %v1303
    %v1614 = vmul.f32 %v1303, %v1613
    %v1615 = vsub.f32 1.0, %v1614
    %v1616 = vmul.f32 %v1613, %v1615
    %v1617 = vadd.f32 %v1613, %v1616
    %vm1618 = vweird.f32 %v1303
    %vm1619 = vweird.f32 %v1613
    %vm1620 = vmor %vm1618, %vm1619
    %v1621 = vsel %vm1620, %v1613, %v1617
    %v1622 = vand.u32 2147483647, %v1303
    %vm1623 = vcmp.eq.f32.partialorder %v1622, 8.507059e+37
    %v1624 = vand.u32 %v1303, 2147483648
    %v1625 = vor.u32 1.1754944e-38, %v1624
    %v1626 = vsel %vm1623, %v1625, %v1621
    %v1627 = vmul.f32 %v1239, %v1626
    %v1628 = vrcp.pop %v1305
    %v1629 = vmul.f32 %v1305, %v1628
    %v1630 = vsub.f32 1.0, %v1629
    %v1631 = vmul.f32 %v1628, %v1630
    %v1632 = vadd.f32 %v1628, %v1631
    %vm1633 = vweird.f32 %v1305
    %vm1634 = vweird.f32 %v1628
    %vm1635 = vmor %vm1633, %vm1634
    %v1636 = vsel %vm1635, %v1628, %v1632
    %v1637 = vand.u32 2147483647, %v1305
    %vm1638 = vcmp.eq.f32.partialorder %v1637, 8.507059e+37
    %v1639 = vand.u32 %v1305, 2147483648
    %v1640 = vor.u32 1.1754944e-38, %v1639
    %v1641 = vsel %vm1638, %v1640, %v1636
    %v1642 = vmul.f32 %v1241, %v1641
    %v1643 = vrcp.pop %v1307
    %v1644 = vmul.f32 %v1307, %v1643
    %v1645 = vsub.f32 1.0, %v1644
    %v1646 = vmul.f32 %v1643, %v1645
    %v1647 = vadd.f32 %v1643, %v1646
    %vm1648 = vweird.f32 %v1307
    %vm1649 = vweird.f32 %v1643
    %vm1650 = vmor %vm1648, %vm1649
    %v1651 = vsel %vm1650, %v1643, %v1647
    %v1652 = vand.u32 2147483647, %v1307
    %vm1653 = vcmp.eq.f32.partialorder %v1652, 8.507059e+37
    %v1654 = vand.u32 %v1307, 2147483648
    %v1655 = vor.u32 1.1754944e-38, %v1654
    %v1656 = vsel %vm1653, %v1655, %v1651
    %v1657 = vmul.f32 %v1243, %v1656
    %v1658 = vrcp.pop %v1309
    %v1659 = vmul.f32 %v1309, %v1658
    %v1660 = vsub.f32 1.0, %v1659
    %v1661 = vmul.f32 %v1658, %v1660
    %v1662 = vadd.f32 %v1658, %v1661
    %vm1663 = vweird.f32 %v1309
    %vm1664 = vweird.f32 %v1658
    %vm1665 = vmor %vm1663, %vm1664
    %v1666 = vsel %vm1665, %v1658, %v1662
    %v1667 = vand.u32 2147483647, %v1309
    %vm1668 = vcmp.eq.f32.partialorder %v1667, 8.507059e+37
    %v1669 = vand.u32 %v1309, 2147483648
    %v1670 = vor.u32 1.1754944e-38, %v1669
    %v1671 = vsel %vm1668, %v1670, %v1666
    %v1672 = vmul.f32 %v1245, %v1671
    %v1673 = vrcp.pop %v1311
    %v1674 = vmul.f32 %v1311, %v1673
    %v1675 = vsub.f32 1.0, %v1674
    %v1676 = vmul.f32 %v1673, %v1675
    %v1677 = vadd.f32 %v1673, %v1676
    %vm1678 = vweird.f32 %v1311
    %vm1679 = vweird.f32 %v1673
    %vm1680 = vmor %vm1678, %vm1679
    %v1681 = vsel %vm1680, %v1673, %v1677
    %v1682 = vand.u32 2147483647, %v1311
    %vm1683 = vcmp.eq.f32.partialorder %v1682, 8.507059e+37
    %v1684 = vand.u32 %v1311, 2147483648
    %v1685 = vor.u32 1.1754944e-38, %v1684
    %v1686 = vsel %vm1683, %v1685, %v1681
    %v1687 = vmul.f32 %v1247, %v1686
    %v1688 = vrcp.pop %v1313
    %v1689 = vmul.f32 %v1313, %v1688
    %v1690 = vsub.f32 1.0, %v1689
    %v1691 = vmul.f32 %v1688, %v1690
    %v1692 = vadd.f32 %v1688, %v1691
    %vm1693 = vweird.f32 %v1313
    %vm1694 = vweird.f32 %v1688
    %vm1695 = vmor %vm1693, %vm1694
    %v1696 = vsel %vm1695, %v1688, %v1692
    %v1697 = vand.u32 2147483647, %v1313
    %vm1698 = vcmp.eq.f32.partialorder %v1697, 8.507059e+37
    %v1699 = vand.u32 %v1313, 2147483648
    %v1700 = vor.u32 1.1754944e-38, %v1699
    %v1701 = vsel %vm1698, %v1700, %v1696
    %v1702 = vmul.f32 %v1249, %v1701
    %v1703 = vrcp.pop %v1315
    %v1704 = vmul.f32 %v1315, %v1703
    %v1705 = vsub.f32 1.0, %v1704
    %v1706 = vmul.f32 %v1703, %v1705
    %v1707 = vadd.f32 %v1703, %v1706
    %vm1708 = vweird.f32 %v1315
    %vm1709 = vweird.f32 %v1703
    %vm1710 = vmor %vm1708, %vm1709
    %v1711 = vsel %vm1710, %v1703, %v1707
    %v1712 = vand.u32 2147483647, %v1315
    %vm1713 = vcmp.eq.f32.partialorder %v1712, 8.507059e+37
    %v1714 = vand.u32 %v1315, 2147483648
    %v1715 = vor.u32 1.1754944e-38, %v1714
    %v1716 = vsel %vm1713, %v1715, %v1711
    %v1717 = vmul.f32 %v1251, %v1716
    %v1718 = vrcp.pop %v1317
    %v1719 = vmul.f32 %v1317, %v1718
    %v1720 = vsub.f32 1.0, %v1719
    %v1721 = vmul.f32 %v1718, %v1720
    %v1722 = vadd.f32 %v1718, %v1721
    %vm1723 = vweird.f32 %v1317
    %vm1724 = vweird.f32 %v1718
    %vm1725 = vmor %vm1723, %vm1724
    %v1726 = vsel %vm1725, %v1718, %v1722
    %v1727 = vand.u32 2147483647, %v1317
    %vm1728 = vcmp.eq.f32.partialorder %v1727, 8.507059e+37
    %v1729 = vand.u32 %v1317, 2147483648
    %v1730 = vor.u32 1.1754944e-38, %v1729
    %v1731 = vsel %vm1728, %v1730, %v1726
    %v1732 = vmul.f32 %v1253, %v1731
    %v1733 = vrcp.pop %v1319
    %v1734 = vmul.f32 %v1319, %v1733
    %v1735 = vsub.f32 1.0, %v1734
    %v1736 = vmul.f32 %v1733, %v1735
    %v1737 = vadd.f32 %v1733, %v1736
    %vm1738 = vweird.f32 %v1319
    %vm1739 = vweird.f32 %v1733
    %vm1740 = vmor %vm1738, %vm1739
    %v1741 = vsel %vm1740, %v1733, %v1737
    %v1742 = vand.u32 2147483647, %v1319
    %vm1743 = vcmp.eq.f32.partialorder %v1742, 8.507059e+37
    %v1744 = vand.u32 %v1319, 2147483648
    %v1745 = vor.u32 1.1754944e-38, %v1744
    %v1746 = vsel %vm1743, %v1745, %v1741
    %v1747 = vmul.f32 %v1255, %v1746
    %v1748 = vrcp.pop %v1321
    %v1749 = vmul.f32 %v1321, %v1748
    %v1750 = vsub.f32 1.0, %v1749
    %v1751 = vmul.f32 %v1748, %v1750
    %v1752 = vadd.f32 %v1748, %v1751
    %vm1753 = vweird.f32 %v1321
    %vm1754 = vweird.f32 %v1748
    %vm1755 = vmor %vm1753, %vm1754
    %v1756 = vsel %vm1755, %v1748, %v1752
    %v1757 = vand.u32 2147483647, %v1321
    %vm1758 = vcmp.eq.f32.partialorder %v1757, 8.507059e+37
    %v1759 = vand.u32 %v1321, 2147483648
    %v1760 = vor.u32 1.1754944e-38, %v1759
    %v1761 = vsel %vm1758, %v1760, %v1756
    %v1762 = vmul.f32 %v1257, %v1761
    %v1763 = vrcp.pop %v1323
    %v1764 = vmul.f32 %v1323, %v1763
    %v1765 = vsub.f32 1.0, %v1764
    %v1766 = vmul.f32 %v1763, %v1765
    %v1767 = vadd.f32 %v1763, %v1766
    %vm1768 = vweird.f32 %v1323
    %vm1769 = vweird.f32 %v1763
    %vm1770 = vmor %vm1768, %vm1769
    %v1771 = vsel %vm1770, %v1763, %v1767
    %v1772 = vand.u32 2147483647, %v1323
    %vm1773 = vcmp.eq.f32.partialorder %v1772, 8.507059e+37
    %v1774 = vand.u32 %v1323, 2147483648
    %v1775 = vor.u32 1.1754944e-38, %v1774
    %v1776 = vsel %vm1773, %v1775, %v1771
    %v1777 = vmul.f32 %v1259, %v1776
    %v1778 = vrcp.pop %v1325
    %v1779 = vmul.f32 %v1325, %v1778
    %v1780 = vsub.f32 1.0, %v1779
    %v1781 = vmul.f32 %v1778, %v1780
    %v1782 = vadd.f32 %v1778, %v1781
    %vm1783 = vweird.f32 %v1325
    %vm1784 = vweird.f32 %v1778
    %vm1785 = vmor %vm1783, %vm1784
    %v1786 = vsel %vm1785, %v1778, %v1782
    %v1787 = vand.u32 2147483647, %v1325
    %vm1788 = vcmp.eq.f32.partialorder %v1787, 8.507059e+37
    %v1789 = vand.u32 %v1325, 2147483648
    %v1790 = vor.u32 1.1754944e-38, %v1789
    %v1791 = vsel %vm1788, %v1790, %v1786
    %v1792 = vmul.f32 %v1261, %v1791
    %v1793 = vrcp.pop %v1327
    %v1794 = vmul.f32 %v1327, %v1793
    %v1795 = vsub.f32 1.0, %v1794
    %v1796 = vmul.f32 %v1793, %v1795
    %v1797 = vadd.f32 %v1793, %v1796
    %vm1798 = vweird.f32 %v1327
    %vm1799 = vweird.f32 %v1793
    %vm1800 = vmor %vm1798, %vm1799
    %v1801 = vsel %vm1800, %v1793, %v1797
    %v1802 = vand.u32 2147483647, %v1327
    %vm1803 = vcmp.eq.f32.partialorder %v1802, 8.507059e+37
    %v1804 = vand.u32 %v1327, 2147483648
    %v1805 = vor.u32 1.1754944e-38, %v1804
    %v1806 = vsel %vm1803, %v1805, %v1801
    %v1807 = vmul.f32 %v1263, %v1806
    %1808 = vst [vmem:[#allocation8] sm:$0xff] %v1342
    %1809 = vst [vmem:[#allocation8 + $0x8] sm:$0xff] %v1357
    %1810 = vst [vmem:[#allocation8 + $0x10] sm:$0xff] %v1372
    %1811 = vst [vmem:[#allocation8 + $0x18] sm:$0xff] %v1387
    %1812 = vst [vmem:[#allocation8 + $0x20] sm:$0xff] %v1402
    %1813 = vst [vmem:[#allocation8 + $0x28] sm:$0xff] %v1417
    %1814 = vst [vmem:[#allocation8 + $0x30] sm:$0xff] %v1432
    %1815 = vst [vmem:[#allocation8 + $0x38] sm:$0xff] %v1447
    %1816 = vst [vmem:[#allocation8 + $0x40] sm:$0xff] %v1462
    %1817 = vst [vmem:[#allocation8 + $0x48] sm:$0xff] %v1477
    %1818 = vst [vmem:[#allocation8 + $0x50] sm:$0xff] %v1492
    %1819 = vst [vmem:[#allocation8 + $0x58] sm:$0xff] %v1507
    %1820 = vst [vmem:[#allocation8 + $0x60] sm:$0xff] %v1522
    %1821 = vst [vmem:[#allocation8 + $0x68] sm:$0xff] %v1537
    %1822 = vst [vmem:[#allocation8 + $0x70] sm:$0xff] %v1552
    %1823 = vst [vmem:[#allocation8 + $0x78] sm:$0xff] %v1567
    %1824 = vst [vmem:[#allocation8 + $0x80] sm:$0xff] %v1582
    %1825 = vst [vmem:[#allocation8 + $0x88] sm:$0xff] %v1597
    %1826 = vst [vmem:[#allocation8 + $0x90] sm:$0xff] %v1612
    %1827 = vst [vmem:[#allocation8 + $0x98] sm:$0xff] %v1627
    %1828 = vst [vmem:[#allocation8 + $0xa0] sm:$0xff] %v1642
    %1829 = vst [vmem:[#allocation8 + $0xa8] sm:$0xff] %v1657
    %1830 = vst [vmem:[#allocation8 + $0xb0] sm:$0xff] %v1672
    %1831 = vst [vmem:[#allocation8 + $0xb8] sm:$0xff] %v1687
    %1832 = vst [vmem:[#allocation8 + $0xc0] sm:$0xff] %v1702
    %1833 = vst [vmem:[#allocation8 + $0xc8] sm:$0xff] %v1717
    %1834 = vst [vmem:[#allocation8 + $0xd0] sm:$0xff] %v1732
    %1835 = vst [vmem:[#allocation8 + $0xd8] sm:$0xff] %v1747
    %1836 = vst [vmem:[#allocation8 + $0xe0] sm:$0xff] %v1762
    %1837 = vst [vmem:[#allocation8 + $0xe8] sm:$0xff] %v1777
    %1838 = vst [vmem:[#allocation8 + $0xf0] sm:$0xff] %v1792
    %1839 = vst [vmem:[#allocation8 + $0xf8] sm:$0xff] %v1807
    // Predicated region
    $region38: #{tpu_custom_call.1} parent=1 // pred_check
      _
    $region39: #{tpu_custom_call.1} parent=1 // pred_check_branch
      %1841 = sbr.rel (0) target = $region41
    $region40: #{tpu_custom_call.1} parent=1 // pred_region
      %1843 = vsyncadd [#allocation4], 0
      %s1844 = sshll.u32 [#allocation8], 4
      %s1845 = int_to_ptr.vmem [resolvable:$true] %s1844
      %s1846 = sshll.u32 %s6, 4
      %s1847 = int_to_ptr.hbm [resolvable:$true] %s1846
      %1852 = dma.vmem_to_hbm [thread:$0]  %s1845, 4096, %s1847, [#allocation4], 128, 128, 8
    $region41: #{tpu_custom_call.1} parent=1 // pred_fallthru
      _
    // Predicated region
    $region42: #{tpu_custom_call.1} parent=1 // pred_check
      _
    $region43: #{tpu_custom_call.1} parent=1 // pred_check_branch
      %1854 = sbr.rel (0) target = $region45
    $region44: #{tpu_custom_call.1} parent=1 // pred_region
      %1856 = dma.done [#allocation4], 4096
    $region45: #{tpu_custom_call.1} parent=1 // pred_fallthru
      _
    %1857 = vsyncpa [#allocation3], 1
    %1858 = vsyncpa [#allocation6], 1
    %1859 = vsyncpa [#allocation4], 1

</llo_original>
